<compile_context>
chip_gen: v7x
topology: tpu7x:2x2x1
jax: 0.10.0
libtpu: 0.0.40
codegen_flags: <defaults>
</compile_context>

<pallas_src>
import functools

import jax
import jax.numpy as jnp
from jax import lax
from jax.experimental import pallas as pl
from jax.experimental.pallas import tpu as pltpu

BN_EPS = 1e-5


def _conv_block_kernel(x_ref, m_ref, w1_ref, g1_ref, be1_ref, w2_ref, g2_ref,
                       be2_ref, o_ref, xs1_ref, col1_ref, xs2_ref, col2_ref,
                       *, W, lpad):
    """Fused (conv3x3 -> BN(batch stats) -> ReLU) x 2, channel-major / lane-dense.

    x_ref   : (Cin, S)            bf16, S = N*H*W on lanes
    m_ref   : (9, S)              bf16 0/1 boundary masks per tap
    w1_ref  : (Cout, 9*Cin)       bf16 (taps folded into the contraction dim)
    w2_ref  : (Cout, 9*Cout)      bf16
    g*/be*  : (Cout, 1)           f32 BN gamma/beta
    o_ref   : (Cout, S)           lane-dense output
    xs*_ref : (C, lpad+S+lpad)    bf16 lane-padded activation scratch
    col*_ref: (9*C, S)            bf16 im2col scratch (matmul-ready orientation)
    """
    Cin, S = x_ref.shape
    Cout = w1_ref.shape[0]
    inv_s = 1.0 / S

    def stage(src_val, xs_ref, col_ref, w_ref, g_ref, be_ref, c):
        # Lane-padded activation: zero ONLY the halos, write the payload once (bf16).
        xs_ref[:, :lpad] = jnp.zeros((c, lpad), xs_ref.dtype)
        xs_ref[:, lpad + S:] = jnp.zeros((c, lpad), xs_ref.dtype)
        xs_ref[:, lpad:lpad + S] = src_val

        # im2col directly as (9*c, S): tap (ky,kx) is a static lane-shifted window of
        # the padded buffer; the mask reproduces the conv zero padding and keeps
        # image/batch rows from bleeding into each other.  No transpose needed later.
        for k in range(9):
            dy, dx = k // 3 - 1, k % 3 - 1
            off = dy * W + dx
            col_ref[k * c:(k + 1) * c, :] = (
                xs_ref[:, lpad + off:lpad + off + S] * m_ref[k:k + 1, :])

        # One MXU matmul per stage with the long S axis on the output lanes.
        acc = jnp.dot(w_ref[...], col_ref[...],
                      preferred_element_type=jnp.float32)          # (Cout, S) f32

        # Train-mode BatchNorm over (batch, spatial) folded into per-channel
        # scale/shift, then ReLU.  Conv bias omitted: exact no-op under batch-stat BN.
        m = jnp.sum(acc, axis=1, keepdims=True) * inv_s            # (Cout, 1)
        q = jnp.sum(acc * acc, axis=1, keepdims=True) * inv_s
        scale = g_ref[...] * lax.rsqrt(q - m * m + BN_EPS)
        shift = be_ref[...] - m * scale
        return jnp.maximum(acc * scale + shift, 0.0)

    y1 = stage(x_ref[...], xs1_ref, col1_ref, w1_ref, g1_ref, be1_ref, Cin)
    o_ref[...] = stage(y1.astype(jnp.bfloat16), xs2_ref, col2_ref,
                       w2_ref, g2_ref, be2_ref, Cout).astype(o_ref.dtype)


def _tap_masks(N, H, W):
    """(9, N*H*W) bf16 0/1 masks: tap k = ky*3+kx valid where the shifted pixel is in-image."""
    yy = jnp.arange(H)[:, None]
    xx = jnp.arange(W)[None, :]
    ms = []
    for ky in range(3):
        for kx in range(3):
            dy, dx = ky - 1, kx - 1
            m = ((yy + dy >= 0) & (yy + dy < H) &
                 (xx + dx >= 0) & (xx + dx < W))
            ms.append(jnp.broadcast_to(m[None], (N, H, W)).reshape(N * H * W))
    return jnp.stack(ms, axis=0).astype(jnp.bfloat16)


def conv_block_forward(x_nchw, params):
    """ConvBlock.forward: (conv3x3 -> BN -> ReLU) x 2.  Input/output are NCHW."""
    N, Cin, H, W = x_nchw.shape
    Cout = params["w1"].shape[0]
    S = N * H * W
    LPAD = ((W + 1 + 127) // 128) * 128          # lane halo, multiple of 128, >= W+1

    # Channel-major, lane-dense layouts; bf16 cast done ONCE here (not per-tap in-kernel).
    x_cm = jnp.transpose(x_nchw, (1, 0, 2, 3)).reshape(Cin, S).astype(jnp.bfloat16)

    # PyTorch OIHW -> (Cout, 9*C) with tap-major contraction (k = ky*3 + kx).
    w1m = jnp.transpose(params["w1"], (0, 2, 3, 1)).reshape(Cout, 9 * Cin).astype(jnp.bfloat16)
    w2m = jnp.transpose(params["w2"], (0, 2, 3, 1)).reshape(Cout, 9 * Cout).astype(jnp.bfloat16)

    g1 = params["g1"].reshape(Cout, 1)
    be1 = params["beta1"].reshape(Cout, 1)
    g2 = params["g2"].reshape(Cout, 1)
    be2 = params["beta2"].reshape(Cout, 1)
    masks = _tap_masks(N, H, W)
    # Conv biases b1/b2 are deliberately NOT passed to the kernel: a bias added before
    # train-mode BatchNorm is a mathematical no-op (the reference below keeps them).

    vmem = pl.BlockSpec(memory_space=pltpu.MemorySpace.VMEM)
    out_cs = pl.pallas_call(
        functools.partial(_conv_block_kernel, W=W, lpad=LPAD),
        out_shape=jax.ShapeDtypeStruct((Cout, S), x_nchw.dtype),
        in_specs=[vmem] * 8,
        out_specs=vmem,
        scratch_shapes=[
            pltpu.VMEM((Cin, 2 * LPAD + S), jnp.bfloat16),    # stage-1 lane-padded act
            pltpu.VMEM((9 * Cin, S), jnp.bfloat16),           # stage-1 im2col
            pltpu.VMEM((Cout, 2 * LPAD + S), jnp.bfloat16),   # stage-2 lane-padded act
            pltpu.VMEM((9 * Cout, S), jnp.bfloat16),          # stage-2 im2col
        ],
        compiler_params=pltpu.CompilerParams(vmem_limit_bytes=32 * 1024 * 1024),
    )(x_cm, masks, w1m, g1, be1, w2m, g2, be2)

    out = out_cs.reshape(Cout, N, H, W)
    return jnp.transpose(out, (1, 0, 2, 3))                       # -> NCHW


def conv_block_reference(x_nchw, params):
    """Pure-JAX f32 reference with identical semantics (incl. the conv biases)."""
    def step(x, w, b, g, be):
        y = lax.conv_general_dilated(
            x, w, window_strides=(1, 1), padding=((1, 1), (1, 1)),
            dimension_numbers=("NCHW", "OIHW", "NCHW"))
        y = y + b[None, :, None, None]
        mean = jnp.mean(y, axis=(0, 2, 3), keepdims=True)
        var = jnp.mean((y - mean) ** 2, axis=(0, 2, 3), keepdims=True)
        y = (y - mean) / jnp.sqrt(var + BN_EPS)
        y = y * g[None, :, None, None] + be[None, :, None, None]
        return jnp.maximum(y, 0.0)

    y = step(x_nchw, params["w1"], params["b1"], params["g1"], params["beta1"])
    return step(y, params["w2"], params["b2"], params["g2"], params["beta2"])


def init_params(key, ch_in, ch_out):
    k1, k2, k3, k4 = jax.random.split(key, 4)
    return {
        # Conv2d(ch_in, ch_out, 3) weights in PyTorch OIHW layout.
        "w1": 0.1 * jax.random.normal(k1, (ch_out, ch_in, 3, 3), jnp.float32),
        "b1": 0.1 * jax.random.normal(k2, (ch_out,), jnp.float32),
        "g1": jnp.ones((ch_out,), jnp.float32),                   # BN weight init
        "beta1": jnp.zeros((ch_out,), jnp.float32),               # BN bias init
        "w2": 0.1 * jax.random.normal(k3, (ch_out, ch_out, 3, 3), jnp.float32),
        "b2": 0.1 * jax.random.normal(k4, (ch_out,), jnp.float32),
        "g2": jnp.ones((ch_out,), jnp.float32),
        "beta2": jnp.zeros((ch_out,), jnp.float32),
    }


if __name__ == "__main__":
    key = jax.random.PRNGKey(0)
    kx, kp = jax.random.split(key)

    N, C_IN, C_OUT, H, W = 2, 4, 8, 16, 16
    x = jax.random.normal(kx, (N, C_IN, H, W), jnp.float32)       # NCHW like PyTorch
    params = init_params(kp, C_IN, C_OUT)

    out = jax.block_until_ready(conv_block_forward(x, params))
    ref = jax.block_until_ready(conv_block_reference(x, params))

    assert out.shape == (N, C_OUT, H, W)
    max_err = float(jnp.max(jnp.abs(out - ref)))
    mean_err = float(jnp.mean(jnp.abs(out - ref)))
    # bf16 MXU operands (with f32 accumulation) vs. an all-f32 reference on
    # BN-normalized O(1) outputs -> expect ~1e-2-scale max abs error.
    assert max_err < 5e-2, f"max |err| vs reference too large: {max_err}"
    assert mean_err < 1e-2, f"mean |err| vs reference too large: {mean_err}"

    print("KERNEL_OK")
</pallas_src>

<mosaic_0001>
module attributes {stable_mosaic.version = 11 : i64} {
  func.func @_conv_block_kernel(%arg0: memref<4x512xbf16, #tpu.memory_space<vmem>>, %arg1: memref<9x512xbf16, #tpu.memory_space<vmem>>, %arg2: memref<8x36xbf16, #tpu.memory_space<vmem>>, %arg3: memref<8x1xf32, #tpu.memory_space<vmem>>, %arg4: memref<8x1xf32, #tpu.memory_space<vmem>>, %arg5: memref<8x72xbf16, #tpu.memory_space<vmem>>, %arg6: memref<8x1xf32, #tpu.memory_space<vmem>>, %arg7: memref<8x1xf32, #tpu.memory_space<vmem>>, %arg8: memref<8x512xf32, #tpu.memory_space<vmem>>, %arg9: memref<4x768xbf16, #tpu.memory_space<vmem>>, %arg10: memref<36x512xbf16, #tpu.memory_space<vmem>>, %arg11: memref<8x768xbf16, #tpu.memory_space<vmem>>, %arg12: memref<72x512xbf16, #tpu.memory_space<vmem>>) attributes {dimension_semantics = [], scalar_prefetch = 0 : i64, scratch_operands = 4 : i64, tpu.core_type = #tpu.core_type<tc>} {
    %c0 = arith.constant 0 : index
    %c0_0 = arith.constant 0 : index
    %0 = vector.load %arg0[%c0, %c0_0] : memref<4x512xbf16, #tpu.memory_space<vmem>>, vector<4x512xbf16>
    %cst = arith.constant 0.000000e+00 : bf16
    %1 = vector.broadcast %cst : bf16 to vector<4x128xbf16>
    %c0_1 = arith.constant 0 : index
    %c0_2 = arith.constant 0 : index
    %2 = vector.load %arg9[%c0_1, %c0_2] : memref<4x768xbf16, #tpu.memory_space<vmem>>, vector<4x128xbf16>
    tpu.vector_store %arg9[%c0_1, %c0_2], %1 {strides = array<i32>} : memref<4x768xbf16, #tpu.memory_space<vmem>>, vector<4x128xbf16>,
    %cst_3 = arith.constant 0.000000e+00 : bf16
    %3 = vector.broadcast %cst_3 : bf16 to vector<4x128xbf16>
    %c0_4 = arith.constant 0 : index
    %c640 = arith.constant 640 : index
    %4 = vector.load %arg9[%c0_4, %c640] : memref<4x768xbf16, #tpu.memory_space<vmem>>, vector<4x128xbf16>
    tpu.vector_store %arg9[%c0_4, %c640], %3 {strides = array<i32>} : memref<4x768xbf16, #tpu.memory_space<vmem>>, vector<4x128xbf16>,
    %c0_5 = arith.constant 0 : index
    %c128 = arith.constant 128 : index
    %5 = vector.load %arg9[%c0_5, %c128] : memref<4x768xbf16, #tpu.memory_space<vmem>>, vector<4x512xbf16>
    tpu.vector_store %arg9[%c0_5, %c128], %0 {strides = array<i32>} : memref<4x768xbf16, #tpu.memory_space<vmem>>, vector<4x512xbf16>,
    %c0_6 = arith.constant 0 : index
    %c111 = arith.constant 111 : index
    %6 = vector.load %arg9[%c0_6, %c111] : memref<4x768xbf16, #tpu.memory_space<vmem>>, vector<4x512xbf16>
    %c0_7 = arith.constant 0 : index
    %c0_8 = arith.constant 0 : index
    %7 = vector.load %arg1[%c0_7, %c0_8] : memref<9x512xbf16, #tpu.memory_space<vmem>>, vector<1x512xbf16>
    %8 = vector.broadcast %7 : vector<1x512xbf16> to vector<4x512xbf16>
    %9 = arith.mulf %6, %8 : vector<4x512xbf16>
    %c0_9 = arith.constant 0 : index
    %c0_10 = arith.constant 0 : index
    %10 = vector.load %arg10[%c0_9, %c0_10] : memref<36x512xbf16, #tpu.memory_space<vmem>>, vector<4x512xbf16>
    tpu.vector_store %arg10[%c0_9, %c0_10], %9 {strides = array<i32>} : memref<36x512xbf16, #tpu.memory_space<vmem>>, vector<4x512xbf16>,
    %c0_11 = arith.constant 0 : index
    %c112 = arith.constant 112 : index
    %11 = vector.load %arg9[%c0_11, %c112] : memref<4x768xbf16, #tpu.memory_space<vmem>>, vector<4x512xbf16>
    %c1 = arith.constant 1 : index
    %c0_12 = arith.constant 0 : index
    %12 = vector.load %arg1[%c1, %c0_12] : memref<9x512xbf16, #tpu.memory_space<vmem>>, vector<1x512xbf16>
    %13 = vector.broadcast %12 : vector<1x512xbf16> to vector<4x512xbf16>
    %14 = arith.mulf %11, %13 : vector<4x512xbf16>
    %c4 = arith.constant 4 : index
    %c0_13 = arith.constant 0 : index
    %15 = vector.load %arg10[%c4, %c0_13] : memref<36x512xbf16, #tpu.memory_space<vmem>>, vector<4x512xbf16>
    tpu.vector_store %arg10[%c4, %c0_13], %14 {strides = array<i32>} : memref<36x512xbf16, #tpu.memory_space<vmem>>, vector<4x512xbf16>,
    %c0_14 = arith.constant 0 : index
    %c113 = arith.constant 113 : index
    %16 = vector.load %arg9[%c0_14, %c113] : memref<4x768xbf16, #tpu.memory_space<vmem>>, vector<4x512xbf16>
    %c2 = arith.constant 2 : index
    %c0_15 = arith.constant 0 : index
    %17 = vector.load %arg1[%c2, %c0_15] : memref<9x512xbf16, #tpu.memory_space<vmem>>, vector<1x512xbf16>
    %18 = vector.broadcast %17 : vector<1x512xbf16> to vector<4x512xbf16>
    %19 = arith.mulf %16, %18 : vector<4x512xbf16>
    %c8 = arith.constant 8 : index
    %c0_16 = arith.constant 0 : index
    %20 = vector.load %arg10[%c8, %c0_16] : memref<36x512xbf16, #tpu.memory_space<vmem>>, vector<4x512xbf16>
    tpu.vector_store %arg10[%c8, %c0_16], %19 {strides = array<i32>} : memref<36x512xbf16, #tpu.memory_space<vmem>>, vector<4x512xbf16>,
    %c0_17 = arith.constant 0 : index
    %c127 = arith.constant 127 : index
    %21 = vector.load %arg9[%c0_17, %c127] : memref<4x768xbf16, #tpu.memory_space<vmem>>, vector<4x512xbf16>
    %c3 = arith.constant 3 : index
    %c0_18 = arith.constant 0 : index
    %22 = vector.load %arg1[%c3, %c0_18] : memref<9x512xbf16, #tpu.memory_space<vmem>>, vector<1x512xbf16>
    %23 = vector.broadcast %22 : vector<1x512xbf16> to vector<4x512xbf16>
    %24 = arith.mulf %21, %23 : vector<4x512xbf16>
    %c12 = arith.constant 12 : index
    %c0_19 = arith.constant 0 : index
    %25 = vector.load %arg10[%c12, %c0_19] : memref<36x512xbf16, #tpu.memory_space<vmem>>, vector<4x512xbf16>
    tpu.vector_store %arg10[%c12, %c0_19], %24 {strides = array<i32>} : memref<36x512xbf16, #tpu.memory_space<vmem>>, vector<4x512xbf16>,
    %c0_20 = arith.constant 0 : index
    %c128_21 = arith.constant 128 : index
    %26 = vector.load %arg9[%c0_20, %c128_21] : memref<4x768xbf16, #tpu.memory_space<vmem>>, vector<4x512xbf16>
    %c4_22 = arith.constant 4 : index
    %c0_23 = arith.constant 0 : index
    %27 = vector.load %arg1[%c4_22, %c0_23] : memref<9x512xbf16, #tpu.memory_space<vmem>>, vector<1x512xbf16>
    %28 = vector.broadcast %27 : vector<1x512xbf16> to vector<4x512xbf16>
    %29 = arith.mulf %26, %28 : vector<4x512xbf16>
    %c16 = arith.constant 16 : index
    %c0_24 = arith.constant 0 : index
    %30 = vector.load %arg10[%c16, %c0_24] : memref<36x512xbf16, #tpu.memory_space<vmem>>, vector<4x512xbf16>
    tpu.vector_store %arg10[%c16, %c0_24], %29 {strides = array<i32>} : memref<36x512xbf16, #tpu.memory_space<vmem>>, vector<4x512xbf16>,
    %c0_25 = arith.constant 0 : index
    %c129 = arith.constant 129 : index
    %31 = vector.load %arg9[%c0_25, %c129] : memref<4x768xbf16, #tpu.memory_space<vmem>>, vector<4x512xbf16>
    %c5 = arith.constant 5 : index
    %c0_26 = arith.constant 0 : index
    %32 = vector.load %arg1[%c5, %c0_26] : memref<9x512xbf16, #tpu.memory_space<vmem>>, vector<1x512xbf16>
    %33 = vector.broadcast %32 : vector<1x512xbf16> to vector<4x512xbf16>
    %34 = arith.mulf %31, %33 : vector<4x512xbf16>
    %c20 = arith.constant 20 : index
    %c0_27 = arith.constant 0 : index
    %35 = vector.load %arg10[%c20, %c0_27] : memref<36x512xbf16, #tpu.memory_space<vmem>>, vector<4x512xbf16>
    tpu.vector_store %arg10[%c20, %c0_27], %34 {strides = array<i32>} : memref<36x512xbf16, #tpu.memory_space<vmem>>, vector<4x512xbf16>,
    %c0_28 = arith.constant 0 : index
    %c143 = arith.constant 143 : index
    %36 = vector.load %arg9[%c0_28, %c143] : memref<4x768xbf16, #tpu.memory_space<vmem>>, vector<4x512xbf16>
    %c6 = arith.constant 6 : index
    %c0_29 = arith.constant 0 : index
    %37 = vector.load %arg1[%c6, %c0_29] : memref<9x512xbf16, #tpu.memory_space<vmem>>, vector<1x512xbf16>
    %38 = vector.broadcast %37 : vector<1x512xbf16> to vector<4x512xbf16>
    %39 = arith.mulf %36, %38 : vector<4x512xbf16>
    %c24 = arith.constant 24 : index
    %c0_30 = arith.constant 0 : index
    %40 = vector.load %arg10[%c24, %c0_30] : memref<36x512xbf16, #tpu.memory_space<vmem>>, vector<4x512xbf16>
    tpu.vector_store %arg10[%c24, %c0_30], %39 {strides = array<i32>} : memref<36x512xbf16, #tpu.memory_space<vmem>>, vector<4x512xbf16>,
    %c0_31 = arith.constant 0 : index
    %c144 = arith.constant 144 : index
    %41 = vector.load %arg9[%c0_31, %c144] : memref<4x768xbf16, #tpu.memory_space<vmem>>, vector<4x512xbf16>
    %c7 = arith.constant 7 : index
    %c0_32 = arith.constant 0 : index
    %42 = vector.load %arg1[%c7, %c0_32] : memref<9x512xbf16, #tpu.memory_space<vmem>>, vector<1x512xbf16>
    %43 = vector.broadcast %42 : vector<1x512xbf16> to vector<4x512xbf16>
    %44 = arith.mulf %41, %43 : vector<4x512xbf16>
    %c28 = arith.constant 28 : index
    %c0_33 = arith.constant 0 : index
    %45 = vector.load %arg10[%c28, %c0_33] : memref<36x512xbf16, #tpu.memory_space<vmem>>, vector<4x512xbf16>
    tpu.vector_store %arg10[%c28, %c0_33], %44 {strides = array<i32>} : memref<36x512xbf16, #tpu.memory_space<vmem>>, vector<4x512xbf16>,
    %c0_34 = arith.constant 0 : index
    %c145 = arith.constant 145 : index
    %46 = vector.load %arg9[%c0_34, %c145] : memref<4x768xbf16, #tpu.memory_space<vmem>>, vector<4x512xbf16>
    %c8_35 = arith.constant 8 : index
    %c0_36 = arith.constant 0 : index
    %47 = vector.load %arg1[%c8_35, %c0_36] : memref<9x512xbf16, #tpu.memory_space<vmem>>, vector<1x512xbf16>
    %48 = vector.broadcast %47 : vector<1x512xbf16> to vector<4x512xbf16>
    %49 = arith.mulf %46, %48 : vector<4x512xbf16>
    %c32 = arith.constant 32 : index
    %c0_37 = arith.constant 0 : index
    %50 = vector.load %arg10[%c32, %c0_37] : memref<36x512xbf16, #tpu.memory_space<vmem>>, vector<4x512xbf16>
    tpu.vector_store %arg10[%c32, %c0_37], %49 {strides = array<i32>} : memref<36x512xbf16, #tpu.memory_space<vmem>>, vector<4x512xbf16>,
    %c0_38 = arith.constant 0 : index
    %c0_39 = arith.constant 0 : index
    %51 = vector.load %arg2[%c0_38, %c0_39] : memref<8x36xbf16, #tpu.memory_space<vmem>>, vector<8x36xbf16>
    %c0_40 = arith.constant 0 : index
    %c0_41 = arith.constant 0 : index
    %52 = vector.load %arg10[%c0_40, %c0_41] : memref<36x512xbf16, #tpu.memory_space<vmem>>, vector<36x512xbf16>
    %cst_42 = arith.constant dense<0.000000e+00> : vector<8x512xf32>
    %53 = tpu.matmul %51, %52, %cst_42 {dimension_numbers = #tpu.dot_dimension_numbers<[1], [0], [0], [1], [0, 0, 1, 1], [], []>} : vector<8x36xbf16>, vector<36x512xbf16>, vector<8x512xf32> -> vector<8x512xf32>
    %cst_43 = arith.constant dense<0.000000e+00> : vector<8xf32>
    %54 = vector.multi_reduction <add>, %53, %cst_43 [1] : vector<8x512xf32> to vector<8xf32>
    %55 = vector.shape_cast %54 : vector<8xf32> to vector<8x1xf32>
    %cst_44 = arith.constant 0.001953125 : f32
    %56 = vector.broadcast %cst_44 : f32 to vector<8x1xf32>
    %57 = arith.mulf %55, %56 : vector<8x1xf32>
    %58 = arith.mulf %53, %53 : vector<8x512xf32>
    %cst_45 = arith.constant dense<0.000000e+00> : vector<8xf32>
    %59 = vector.multi_reduction <add>, %58, %cst_45 [1] : vector<8x512xf32> to vector<8xf32>
    %60 = vector.shape_cast %59 : vector<8xf32> to vector<8x1xf32>
    %cst_46 = arith.constant 0.001953125 : f32
    %61 = vector.broadcast %cst_46 : f32 to vector<8x1xf32>
    %62 = arith.mulf %60, %61 : vector<8x1xf32>
    %c0_47 = arith.constant 0 : index
    %c0_48 = arith.constant 0 : index
    %63 = vector.load %arg3[%c0_47, %c0_48] : memref<8x1xf32, #tpu.memory_space<vmem>>, vector<8x1xf32>
    %64 = arith.mulf %57, %57 : vector<8x1xf32>
    %65 = arith.subf %62, %64 : vector<8x1xf32>
    %cst_49 = arith.constant 9.99999974E-6 : f32
    %66 = vector.broadcast %cst_49 : f32 to vector<8x1xf32>
    %67 = arith.addf %65, %66 : vector<8x1xf32>
    %68 = math.rsqrt %67 : vector<8x1xf32>
    %69 = arith.mulf %63, %68 : vector<8x1xf32>
    %c0_50 = arith.constant 0 : index
    %c0_51 = arith.constant 0 : index
    %70 = vector.load %arg4[%c0_50, %c0_51] : memref<8x1xf32, #tpu.memory_space<vmem>>, vector<8x1xf32>
    %71 = arith.mulf %57, %69 : vector<8x1xf32>
    %72 = arith.subf %70, %71 : vector<8x1xf32>
    %73 = vector.broadcast %69 : vector<8x1xf32> to vector<8x512xf32>
    %74 = arith.mulf %53, %73 : vector<8x512xf32>
    %75 = vector.broadcast %72 : vector<8x1xf32> to vector<8x512xf32>
    %76 = arith.addf %74, %75 : vector<8x512xf32>
    %cst_52 = arith.constant 0.000000e+00 : f32
    %77 = vector.broadcast %cst_52 : f32 to vector<8x512xf32>
    %78 = arith.maximumf %76, %77 : vector<8x512xf32>
    %79 = arith.truncf %78 : vector<8x512xf32> to vector<8x512xbf16>
    %cst_53 = arith.constant 0.000000e+00 : bf16
    %80 = vector.broadcast %cst_53 : bf16 to vector<8x128xbf16>
    %c0_54 = arith.constant 0 : index
    %c0_55 = arith.constant 0 : index
    %81 = vector.load %arg11[%c0_54, %c0_55] : memref<8x768xbf16, #tpu.memory_space<vmem>>, vector<8x128xbf16>
    tpu.vector_store %arg11[%c0_54, %c0_55], %80 {strides = array<i32>} : memref<8x768xbf16, #tpu.memory_space<vmem>>, vector<8x128xbf16>,
    %cst_56 = arith.constant 0.000000e+00 : bf16
    %82 = vector.broadcast %cst_56 : bf16 to vector<8x128xbf16>
    %c0_57 = arith.constant 0 : index
    %c640_58 = arith.constant 640 : index
    %83 = vector.load %arg11[%c0_57, %c640_58] : memref<8x768xbf16, #tpu.memory_space<vmem>>, vector<8x128xbf16>
    tpu.vector_store %arg11[%c0_57, %c640_58], %82 {strides = array<i32>} : memref<8x768xbf16, #tpu.memory_space<vmem>>, vector<8x128xbf16>,
    %c0_59 = arith.constant 0 : index
    %c128_60 = arith.constant 128 : index
    %84 = vector.load %arg11[%c0_59, %c128_60] : memref<8x768xbf16, #tpu.memory_space<vmem>>, vector<8x512xbf16>
    tpu.vector_store %arg11[%c0_59, %c128_60], %79 {strides = array<i32>} : memref<8x768xbf16, #tpu.memory_space<vmem>>, vector<8x512xbf16>,
    %c0_61 = arith.constant 0 : index
    %c111_62 = arith.constant 111 : index
    %85 = vector.load %arg11[%c0_61, %c111_62] : memref<8x768xbf16, #tpu.memory_space<vmem>>, vector<8x512xbf16>
    %c0_63 = arith.constant 0 : index
    %c0_64 = arith.constant 0 : index
    %86 = vector.load %arg1[%c0_63, %c0_64] : memref<9x512xbf16, #tpu.memory_space<vmem>>, vector<1x512xbf16>
    %87 = vector.broadcast %86 : vector<1x512xbf16> to vector<8x512xbf16>
    %88 = arith.mulf %85, %87 : vector<8x512xbf16>
    %c0_65 = arith.constant 0 : index
    %c0_66 = arith.constant 0 : index
    %89 = vector.load %arg12[%c0_65, %c0_66] : memref<72x512xbf16, #tpu.memory_space<vmem>>, vector<8x512xbf16>
    tpu.vector_store %arg12[%c0_65, %c0_66], %88 {strides = array<i32>} : memref<72x512xbf16, #tpu.memory_space<vmem>>, vector<8x512xbf16>,
    %c0_67 = arith.constant 0 : index
    %c112_68 = arith.constant 112 : index
    %90 = vector.load %arg11[%c0_67, %c112_68] : memref<8x768xbf16, #tpu.memory_space<vmem>>, vector<8x512xbf16>
    %c1_69 = arith.constant 1 : index
    %c0_70 = arith.constant 0 : index
    %91 = vector.load %arg1[%c1_69, %c0_70] : memref<9x512xbf16, #tpu.memory_space<vmem>>, vector<1x512xbf16>
    %92 = vector.broadcast %91 : vector<1x512xbf16> to vector<8x512xbf16>
    %93 = arith.mulf %90, %92 : vector<8x512xbf16>
    %c8_71 = arith.constant 8 : index
    %c0_72 = arith.constant 0 : index
    %94 = vector.load %arg12[%c8_71, %c0_72] : memref<72x512xbf16, #tpu.memory_space<vmem>>, vector<8x512xbf16>
    tpu.vector_store %arg12[%c8_71, %c0_72], %93 {strides = array<i32>} : memref<72x512xbf16, #tpu.memory_space<vmem>>, vector<8x512xbf16>,
    %c0_73 = arith.constant 0 : index
    %c113_74 = arith.constant 113 : index
    %95 = vector.load %arg11[%c0_73, %c113_74] : memref<8x768xbf16, #tpu.memory_space<vmem>>, vector<8x512xbf16>
    %c2_75 = arith.constant 2 : index
    %c0_76 = arith.constant 0 : index
    %96 = vector.load %arg1[%c2_75, %c0_76] : memref<9x512xbf16, #tpu.memory_space<vmem>>, vector<1x512xbf16>
    %97 = vector.broadcast %96 : vector<1x512xbf16> to vector<8x512xbf16>
    %98 = arith.mulf %95, %97 : vector<8x512xbf16>
    %c16_77 = arith.constant 16 : index
    %c0_78 = arith.constant 0 : index
    %99 = vector.load %arg12[%c16_77, %c0_78] : memref<72x512xbf16, #tpu.memory_space<vmem>>, vector<8x512xbf16>
    tpu.vector_store %arg12[%c16_77, %c0_78], %98 {strides = array<i32>} : memref<72x512xbf16, #tpu.memory_space<vmem>>, vector<8x512xbf16>,
    %c0_79 = arith.constant 0 : index
    %c127_80 = arith.constant 127 : index
    %100 = vector.load %arg11[%c0_79, %c127_80] : memref<8x768xbf16, #tpu.memory_space<vmem>>, vector<8x512xbf16>
    %c3_81 = arith.constant 3 : index
    %c0_82 = arith.constant 0 : index
    %101 = vector.load %arg1[%c3_81, %c0_82] : memref<9x512xbf16, #tpu.memory_space<vmem>>, vector<1x512xbf16>
    %102 = vector.broadcast %101 : vector<1x512xbf16> to vector<8x512xbf16>
    %103 = arith.mulf %100, %102 : vector<8x512xbf16>
    %c24_83 = arith.constant 24 : index
    %c0_84 = arith.constant 0 : index
    %104 = vector.load %arg12[%c24_83, %c0_84] : memref<72x512xbf16, #tpu.memory_space<vmem>>, vector<8x512xbf16>
    tpu.vector_store %arg12[%c24_83, %c0_84], %103 {strides = array<i32>} : memref<72x512xbf16, #tpu.memory_space<vmem>>, vector<8x512xbf16>,
    %c0_85 = arith.constant 0 : index
    %c128_86 = arith.constant 128 : index
    %105 = vector.load %arg11[%c0_85, %c128_86] : memref<8x768xbf16, #tpu.memory_space<vmem>>, vector<8x512xbf16>
    %c4_87 = arith.constant 4 : index
    %c0_88 = arith.constant 0 : index
    %106 = vector.load %arg1[%c4_87, %c0_88] : memref<9x512xbf16, #tpu.memory_space<vmem>>, vector<1x512xbf16>
    %107 = vector.broadcast %106 : vector<1x512xbf16> to vector<8x512xbf16>
    %108 = arith.mulf %105, %107 : vector<8x512xbf16>
    %c32_89 = arith.constant 32 : index
    %c0_90 = arith.constant 0 : index
    %109 = vector.load %arg12[%c32_89, %c0_90] : memref<72x512xbf16, #tpu.memory_space<vmem>>, vector<8x512xbf16>
    tpu.vector_store %arg12[%c32_89, %c0_90], %108 {strides = array<i32>} : memref<72x512xbf16, #tpu.memory_space<vmem>>, vector<8x512xbf16>,
    %c0_91 = arith.constant 0 : index
    %c129_92 = arith.constant 129 : index
    %110 = vector.load %arg11[%c0_91, %c129_92] : memref<8x768xbf16, #tpu.memory_space<vmem>>, vector<8x512xbf16>
    %c5_93 = arith.constant 5 : index
    %c0_94 = arith.constant 0 : index
    %111 = vector.load %arg1[%c5_93, %c0_94] : memref<9x512xbf16, #tpu.memory_space<vmem>>, vector<1x512xbf16>
    %112 = vector.broadcast %111 : vector<1x512xbf16> to vector<8x512xbf16>
    %113 = arith.mulf %110, %112 : vector<8x512xbf16>
    %c40 = arith.constant 40 : index
    %c0_95 = arith.constant 0 : index
    %114 = vector.load %arg12[%c40, %c0_95] : memref<72x512xbf16, #tpu.memory_space<vmem>>, vector<8x512xbf16>
    tpu.vector_store %arg12[%c40, %c0_95], %113 {strides = array<i32>} : memref<72x512xbf16, #tpu.memory_space<vmem>>, vector<8x512xbf16>,
    %c0_96 = arith.constant 0 : index
    %c143_97 = arith.constant 143 : index
    %115 = vector.load %arg11[%c0_96, %c143_97] : memref<8x768xbf16, #tpu.memory_space<vmem>>, vector<8x512xbf16>
    %c6_98 = arith.constant 6 : index
    %c0_99 = arith.constant 0 : index
    %116 = vector.load %arg1[%c6_98, %c0_99] : memref<9x512xbf16, #tpu.memory_space<vmem>>, vector<1x512xbf16>
    %117 = vector.broadcast %116 : vector<1x512xbf16> to vector<8x512xbf16>
    %118 = arith.mulf %115, %117 : vector<8x512xbf16>
    %c48 = arith.constant 48 : index
    %c0_100 = arith.constant 0 : index
    %119 = vector.load %arg12[%c48, %c0_100] : memref<72x512xbf16, #tpu.memory_space<vmem>>, vector<8x512xbf16>
    tpu.vector_store %arg12[%c48, %c0_100], %118 {strides = array<i32>} : memref<72x512xbf16, #tpu.memory_space<vmem>>, vector<8x512xbf16>,
    %c0_101 = arith.constant 0 : index
    %c144_102 = arith.constant 144 : index
    %120 = vector.load %arg11[%c0_101, %c144_102] : memref<8x768xbf16, #tpu.memory_space<vmem>>, vector<8x512xbf16>
    %c7_103 = arith.constant 7 : index
    %c0_104 = arith.constant 0 : index
    %121 = vector.load %arg1[%c7_103, %c0_104] : memref<9x512xbf16, #tpu.memory_space<vmem>>, vector<1x512xbf16>
    %122 = vector.broadcast %121 : vector<1x512xbf16> to vector<8x512xbf16>
    %123 = arith.mulf %120, %122 : vector<8x512xbf16>
    %c56 = arith.constant 56 : index
    %c0_105 = arith.constant 0 : index
    %124 = vector.load %arg12[%c56, %c0_105] : memref<72x512xbf16, #tpu.memory_space<vmem>>, vector<8x512xbf16>
    tpu.vector_store %arg12[%c56, %c0_105], %123 {strides = array<i32>} : memref<72x512xbf16, #tpu.memory_space<vmem>>, vector<8x512xbf16>,
    %c0_106 = arith.constant 0 : index
    %c145_107 = arith.constant 145 : index
    %125 = vector.load %arg11[%c0_106, %c145_107] : memref<8x768xbf16, #tpu.memory_space<vmem>>, vector<8x512xbf16>
    %c8_108 = arith.constant 8 : index
    %c0_109 = arith.constant 0 : index
    %126 = vector.load %arg1[%c8_108, %c0_109] : memref<9x512xbf16, #tpu.memory_space<vmem>>, vector<1x512xbf16>
    %127 = vector.broadcast %126 : vector<1x512xbf16> to vector<8x512xbf16>
    %128 = arith.mulf %125, %127 : vector<8x512xbf16>
    %c64 = arith.constant 64 : index
    %c0_110 = arith.constant 0 : index
    %129 = vector.load %arg12[%c64, %c0_110] : memref<72x512xbf16, #tpu.memory_space<vmem>>, vector<8x512xbf16>
    tpu.vector_store %arg12[%c64, %c0_110], %128 {strides = array<i32>} : memref<72x512xbf16, #tpu.memory_space<vmem>>, vector<8x512xbf16>,
    %c0_111 = arith.constant 0 : index
    %c0_112 = arith.constant 0 : index
    %130 = vector.load %arg5[%c0_111, %c0_112] : memref<8x72xbf16, #tpu.memory_space<vmem>>, vector<8x72xbf16>
    %c0_113 = arith.constant 0 : index
    %c0_114 = arith.constant 0 : index
    %131 = vector.load %arg12[%c0_113, %c0_114] : memref<72x512xbf16, #tpu.memory_space<vmem>>, vector<72x512xbf16>
    %cst_115 = arith.constant dense<0.000000e+00> : vector<8x512xf32>
    %132 = tpu.matmul %130, %131, %cst_115 {dimension_numbers = #tpu.dot_dimension_numbers<[1], [0], [0], [1], [0, 0, 1, 1], [], []>} : vector<8x72xbf16>, vector<72x512xbf16>, vector<8x512xf32> -> vector<8x512xf32>
    %cst_116 = arith.constant dense<0.000000e+00> : vector<8xf32>
    %133 = vector.multi_reduction <add>, %132, %cst_116 [1] : vector<8x512xf32> to vector<8xf32>
    %134 = vector.shape_cast %133 : vector<8xf32> to vector<8x1xf32>
    %cst_117 = arith.constant 0.001953125 : f32
    %135 = vector.broadcast %cst_117 : f32 to vector<8x1xf32>
    %136 = arith.mulf %134, %135 : vector<8x1xf32>
    %137 = arith.mulf %132, %132 : vector<8x512xf32>
    %cst_118 = arith.constant dense<0.000000e+00> : vector<8xf32>
    %138 = vector.multi_reduction <add>, %137, %cst_118 [1] : vector<8x512xf32> to vector<8xf32>
    %139 = vector.shape_cast %138 : vector<8xf32> to vector<8x1xf32>
    %cst_119 = arith.constant 0.001953125 : f32
    %140 = vector.broadcast %cst_119 : f32 to vector<8x1xf32>
    %141 = arith.mulf %139, %140 : vector<8x1xf32>
    %c0_120 = arith.constant 0 : index
    %c0_121 = arith.constant 0 : index
    %142 = vector.load %arg6[%c0_120, %c0_121] : memref<8x1xf32, #tpu.memory_space<vmem>>, vector<8x1xf32>
    %143 = arith.mulf %136, %136 : vector<8x1xf32>
    %144 = arith.subf %141, %143 : vector<8x1xf32>
    %cst_122 = arith.constant 9.99999974E-6 : f32
    %145 = vector.broadcast %cst_122 : f32 to vector<8x1xf32>
    %146 = arith.addf %144, %145 : vector<8x1xf32>
    %147 = math.rsqrt %146 : vector<8x1xf32>
    %148 = arith.mulf %142, %147 : vector<8x1xf32>
    %c0_123 = arith.constant 0 : index
    %c0_124 = arith.constant 0 : index
    %149 = vector.load %arg7[%c0_123, %c0_124] : memref<8x1xf32, #tpu.memory_space<vmem>>, vector<8x1xf32>
    %150 = arith.mulf %136, %148 : vector<8x1xf32>
    %151 = arith.subf %149, %150 : vector<8x1xf32>
    %152 = vector.broadcast %148 : vector<8x1xf32> to vector<8x512xf32>
    %153 = arith.mulf %132, %152 : vector<8x512xf32>
    %154 = vector.broadcast %151 : vector<8x1xf32> to vector<8x512xf32>
    %155 = arith.addf %153, %154 : vector<8x512xf32>
    %cst_125 = arith.constant 0.000000e+00 : f32
    %156 = vector.broadcast %cst_125 : f32 to vector<8x512xf32>
    %157 = arith.maximumf %155, %156 : vector<8x512xf32>
    %c0_126 = arith.constant 0 : index
    %c0_127 = arith.constant 0 : index
    %158 = vector.load %arg8[%c0_126, %c0_127] : memref<8x512xf32, #tpu.memory_space<vmem>>, vector<8x512xf32>
    tpu.vector_store %arg8[%c0_126, %c0_127], %157 {strides = array<i32>} : memref<8x512xf32, #tpu.memory_space<vmem>>, vector<8x512xf32>,
    return
  }
}

</mosaic_0001>

<llo_original>
// kernel: tpu_custom_call.1
$region0: #{tpu_custom_call.1}
  #allocation0 [shape = 'u32[]', space=smem, size = 0x4, offset = 0x4, fixed_abs, tag = 'smem constant byte address 0x4 - core index']
  #allocation1 [shape = 'u32[144,128]{1,0:T(1,128)}', space=vmem, size = 0x12000, scoped, tag = 'internal scratch']
  #allocation2 [shape = 'bf16[4,768]{1,0:T(4,128)(2,1)}', space=vmem, size = 0x1800, scoped, tag = 'scratch operand']
  #allocation3 [shape = 'bf16[36,512]{1,0:T(8,128)(2,1)}', space=vmem, size = 0xa000, scoped, tag = 'scratch operand']
  #allocation4 [shape = 'bf16[8,768]{1,0:T(8,128)(2,1)}', space=vmem, size = 0x3000, scoped, tag = 'scratch operand']
  #allocation5 [shape = 'bf16[72,512]{1,0:T(8,128)(2,1)}', space=vmem, size = 0x12000, scoped, tag = 'scratch operand']
  %s0 = inlined_call_operand.hbm [shape: bf16[4,512], index: 0, kind: input, shape index: {}]
  %s1 = inlined_call_operand.vmem [shape: bf16[9,512], index: 1, kind: input, shape index: {}]
  %s2 = inlined_call_operand.vmem [shape: bf16[8,36], index: 2, kind: input, shape index: {}]
  %s3 = inlined_call_operand.vmem [shape: f32[8,1], index: 3, kind: input, shape index: {}]
  %s4 = inlined_call_operand.vmem [shape: f32[8,1], index: 4, kind: input, shape index: {}]
  %s5 = inlined_call_operand.vmem [shape: bf16[8,72], index: 5, kind: input, shape index: {}]
  %s6 = inlined_call_operand.vmem [shape: f32[8,1], index: 6, kind: input, shape index: {}]
  %s7 = inlined_call_operand.vmem [shape: f32[8,1], index: 7, kind: input, shape index: {}]
  %s8 = inlined_call_operand.hbm [shape: f32[8,512], index: 8, kind: output, shape index: {}]
  %s9 = sld [smem:[#allocation0]]
  $region46: #{tpu_custom_call.1} parent=0
    _
  %s11 = ssub.s32 1, %s9
  %s12 = scalar_select 0, %s11, %s9
  $region1: #{tpu_custom_call.1} parent=0
    #allocation6 [shape = 'u8[4096]{0}', space=vmem, size = 0x1000, scoped, tag = 'input window, operand 0, single buffered']
    #allocation7 [shape = 's32[1]{0}', space=sflag, size = 0x4, scoped, tag = 'scoped memory for tpu_custom_call.1']
    #allocation8 [shape = 's32[1]{0}', space=sflag, size = 0x4, scoped, tag = 'scoped memory for tpu_custom_call.1']
    #allocation9 [shape = 'u8[16384]{0}', space=vmem, size = 0x4000, scoped, tag = 'output window, operand 0, single buffered']
    %13 = vsyncpa [#allocation7], 0
    %14 = vsyncpa [#allocation8], 0
    // Predicated region
    $region2: #{tpu_custom_call.1} parent=1 // pred_check
      _
    $region3: #{tpu_custom_call.1} parent=1 // pred_check_branch
      %16 = sbr.rel (0) target = $region5
    $region4: #{tpu_custom_call.1} parent=1 // pred_region
      %s18 = ssub.s32 128, 128
      %19 = vsyncadd [#allocation7], %s18
      %s21 = sshll.u32 [#allocation6], 4
      %s22 = int_to_ptr.vmem [resolvable:$true] %s21
      %24 = dma.hbm_to_vmem [thread:$0]  %s0, 128, %s22, [#allocation7]
    $region5: #{tpu_custom_call.1} parent=1 // pred_fallthru
      _
    // Predicated region
    $region6: #{tpu_custom_call.1} parent=1 // pred_check
      _
    $region7: #{tpu_custom_call.1} parent=1 // pred_check_branch
      %26 = sbr.rel (0) target = $region9
    $region8: #{tpu_custom_call.1} parent=1 // pred_region
      _
    $region9: #{tpu_custom_call.1} parent=1 // pred_fallthru
      _
    // Predicated region
    $region10: #{tpu_custom_call.1} parent=1 // pred_check
      _
    $region11: #{tpu_custom_call.1} parent=1 // pred_check_branch
      %28 = sbr.rel (0) target = $region13
    $region12: #{tpu_custom_call.1} parent=1 // pred_region
      _
    $region13: #{tpu_custom_call.1} parent=1 // pred_fallthru
      _
    // Predicated region
    $region14: #{tpu_custom_call.1} parent=1 // pred_check
      _
    $region15: #{tpu_custom_call.1} parent=1 // pred_check_branch
      %30 = sbr.rel (0) target = $region17
    $region16: #{tpu_custom_call.1} parent=1 // pred_region
      _
    $region17: #{tpu_custom_call.1} parent=1 // pred_fallthru
      _
    // Predicated region
    $region18: #{tpu_custom_call.1} parent=1 // pred_check
      _
    $region19: #{tpu_custom_call.1} parent=1 // pred_check_branch
      %32 = sbr.rel (0) target = $region21
    $region20: #{tpu_custom_call.1} parent=1 // pred_region
      _
    $region21: #{tpu_custom_call.1} parent=1 // pred_fallthru
      _
    // Predicated region
    $region22: #{tpu_custom_call.1} parent=1 // pred_check
      _
    $region23: #{tpu_custom_call.1} parent=1 // pred_check_branch
      %34 = sbr.rel (0) target = $region25
    $region24: #{tpu_custom_call.1} parent=1 // pred_region
      _
    $region25: #{tpu_custom_call.1} parent=1 // pred_fallthru
      _
    // Predicated region
    $region26: #{tpu_custom_call.1} parent=1 // pred_check
      _
    $region27: #{tpu_custom_call.1} parent=1 // pred_check_branch
      %36 = sbr.rel (0) target = $region29
    $region28: #{tpu_custom_call.1} parent=1 // pred_region
      _
    $region29: #{tpu_custom_call.1} parent=1 // pred_fallthru
      _
    // Predicated region
    $region30: #{tpu_custom_call.1} parent=1 // pred_check
      _
    $region31: #{tpu_custom_call.1} parent=1 // pred_check_branch
      %38 = sbr.rel (0) target = $region33
    $region32: #{tpu_custom_call.1} parent=1 // pred_region
      _
    $region33: #{tpu_custom_call.1} parent=1 // pred_fallthru
      _
    // Predicated region
    $region34: #{tpu_custom_call.1} parent=1 // pred_check
      _
    $region35: #{tpu_custom_call.1} parent=1 // pred_check_branch
      %40 = sbr.rel (0) target = $region37
    $region36: #{tpu_custom_call.1} parent=1 // pred_region
      %41 = dma.done [#allocation7], 128
    $region37: #{tpu_custom_call.1} parent=1 // pred_fallthru
      _
    %v43 = vld [vmem:[#allocation6] sm:$0xff]
    %44 = vst [vmem:[#allocation2] sm:$0x3] 0
    %45 = vst [vmem:[#allocation2 + $0xa] sm:$0x3] 0
    %46 = vst [vmem:[#allocation2 + $0x2] sm:$0xff] %v43
    %v47 = vld [vmem:[#allocation2] sm:$0xff]
    %v48 = vld [vmem:[#allocation2 + $0x8] sm:$0x3]
    %v49 = vld [vmem:[%s1] sm:$0x11]
    %v50 = vld [vmem:[%s1 + $0x8] sm:$0x11]
    %v53 = vunpack.c.l.b16 %v49
    %v54 = vunpack.c.h.b16 %v49
    %v55 = vunpack.c.l.b16 %v50
    %v56 = vunpack.c.h.b16 %v50
    %v57 = vpack.c.b16 %v53, %v53
    %v58 = vpack.c.b16 %v54, %v54
    %v59 = vpack.c.b16 %v55, %v55
    %v60 = vpack.c.b16 %v56, %v56
    %v62 = vpack.i.b16 %v57, %v57
    %v64 = vlaneseq
    %v65 = vshrl.u32 %v64, 7
    %v66 = vsub.s32 0, %v65
    %v67 = vrot.slane %v62, %v66
    %v69 = vpack.i.b16 %v58, %v58
    %v71 = vlaneseq
    %v72 = vshrl.u32 %v71, 7
    %v73 = vsub.s32 0, %v72
    %v74 = vrot.slane %v69, %v73
    %v76 = vpack.i.b16 %v59, %v59
    %v78 = vlaneseq
    %v79 = vshrl.u32 %v78, 7
    %v80 = vsub.s32 0, %v79
    %v81 = vrot.slane %v76, %v80
    %v83 = vpack.i.b16 %v60, %v60
    %v85 = vlaneseq
    %v86 = vshrl.u32 %v85, 7
    %v87 = vsub.s32 0, %v86
    %v88 = vrot.slane %v83, %v87
    %v93 = vcombine.low %v67, %v74
    %v94 = vcombine.low %v81, %v88
    %v96 = vunpack.c.l.s4 1983009808
    %v97 = vunpack.c.0.s8 %v96
    %v98 = vlaneseq
    %v99 = vshrl.u32 %v98, 7
    %v100 = vsub.s32 %v97, %v99
    %v101 = vrot.slane %v93, %v100
    %v103 = vunpack.c.l.s4 1983009808
    %v104 = vunpack.c.0.s8 %v103
    %v105 = vlaneseq
    %v106 = vshrl.u32 %v105, 7
    %v107 = vsub.s32 %v104, %v106
    %v108 = vrot.slane %v94, %v107
    %v109 = vcombine.low %v101, %v108
    %110 = vrot.lane.b32.xlu0 %v109, 111
    %v111 = vpop.permute.xlu0 %110
    %v112 = vrot.slane %v111, 6
    %vm113 = vcmask 908288
    %v114 = vsel %vm113, %v112, %v111
    %v117 = vmul.bf16 %v47, %v114
    %v118 = vmul.bf16 %v48, %v112
    %v121 = vcombine.high %v117, %v117
    %v123 = vunpack.c.l.s4 1983009808
    %v124 = vunpack.c.0.s8 %v123
    %v125 = vlaneseq
    %v126 = vshrl.u32 %v125, 7
    %v127 = vsub.s32 %v124, %v126
    %v128 = vrot.slane %v117, %v127
    %v130 = vunpack.c.l.s4 1983009808
    %v131 = vunpack.c.0.s8 %v130
    %v132 = vlaneseq
    %v133 = vshrl.u32 %v132, 7
    %v134 = vsub.s32 %v131, %v133
    %v135 = vrot.slane %v121, %v134
    %v137 = vunpack.c.l.s4 1983009808
    %v138 = vunpack.c.0.s8 %v137
    %v139 = vlaneseq
    %v140 = vshrl.u32 %v139, 7
    %v141 = vsub.s32 %v138, %v140
    %v142 = vrot.slane %v118, %v141
    %143 = vrot.lane.b32.xlu0 %v128, 17
    %v144 = vpop.permute.xlu0 %143
    %145 = vrot.lane.b32.xlu0 %v135, 17
    %v146 = vpop.permute.xlu0 %145
    %147 = vrot.lane.b32.xlu0 %v142, 17
    %v148 = vpop.permute.xlu0 %147
    %v149 = vrot.slane %v144, 4
    %v150 = vrot.slane %v146, 4
    %v151 = vrot.slane %v148, 4
    %vm152 = vcmask 1043456
    %v153 = vsel %vm152, %v149, %v150
    %vm154 = vcmask 138240
    %v155 = vsel %vm154, %v144, %v153
    %v156 = vsel %vm152, %v150, %v151
    %v157 = vsel %vm154, %v146, %v156
    %160 = vst [vmem:[#allocation3] sm:$0x33] %v155
    %161 = vst [vmem:[#allocation3 + $0x8] sm:$0x33] %v157
    %v162 = vld [vmem:[#allocation2] sm:$0xff]
    %v163 = vld [vmem:[#allocation2 + $0x8] sm:$0x3]
    %v164 = vld [vmem:[%s1] sm:$0x11]
    %v165 = vld [vmem:[%s1 + $0x8] sm:$0x11]
    %v168 = vunpack.c.l.b16 %v164
    %v169 = vunpack.c.h.b16 %v164
    %v170 = vunpack.c.l.b16 %v165
    %v171 = vunpack.c.h.b16 %v165
    %v172 = vpack.c.b16 %v168, %v168
    %v173 = vpack.c.b16 %v169, %v169
    %v174 = vpack.c.b16 %v170, %v170
    %v175 = vpack.c.b16 %v171, %v171
    %v177 = vshrl.u32 %v172, 16
    %v178 = vpack.i.b16 %v177, %v177
    %v180 = vlaneseq
    %v181 = vshrl.u32 %v180, 7
    %v182 = vsub.s32 0, %v181
    %v183 = vrot.slane %v178, %v182
    %v185 = vshrl.u32 %v173, 16
    %v186 = vpack.i.b16 %v185, %v185
    %v188 = vlaneseq
    %v189 = vshrl.u32 %v188, 7
    %v190 = vsub.s32 0, %v189
    %v191 = vrot.slane %v186, %v190
    %v193 = vshrl.u32 %v174, 16
    %v194 = vpack.i.b16 %v193, %v193
    %v196 = vlaneseq
    %v197 = vshrl.u32 %v196, 7
    %v198 = vsub.s32 0, %v197
    %v199 = vrot.slane %v194, %v198
    %v201 = vshrl.u32 %v175, 16
    %v202 = vpack.i.b16 %v201, %v201
    %v204 = vlaneseq
    %v205 = vshrl.u32 %v204, 7
    %v206 = vsub.s32 0, %v205
    %v207 = vrot.slane %v202, %v206
    %v212 = vcombine.low %v183, %v191
    %v213 = vcombine.low %v199, %v207
    %v215 = vunpack.c.l.s4 1983009808
    %v216 = vunpack.c.0.s8 %v215
    %v217 = vlaneseq
    %v218 = vshrl.u32 %v217, 7
    %v219 = vsub.s32 %v216, %v218
    %v220 = vrot.slane %v212, %v219
    %v222 = vunpack.c.l.s4 1983009808
    %v223 = vunpack.c.0.s8 %v222
    %v224 = vlaneseq
    %v225 = vshrl.u32 %v224, 7
    %v226 = vsub.s32 %v223, %v225
    %v227 = vrot.slane %v213, %v226
    %v228 = vcombine.low %v220, %v227
    %229 = vrot.lane.b32.xlu0 %v228, 112
    %v230 = vpop.permute.xlu0 %229
    %v231 = vrot.slane %v230, 6
    %vm232 = vcmask 916480
    %v233 = vsel %vm232, %v231, %v230
    %v236 = vmul.bf16 %v162, %v233
    %v237 = vmul.bf16 %v163, %v231
    %v240 = vcombine.low %v236, %v236
    %v242 = vunpack.c.l.s4 1983009808
    %v243 = vunpack.c.0.s8 %v242
    %v244 = vlaneseq
    %v245 = vshrl.u32 %v244, 7
    %v246 = vsub.s32 %v243, %v245
    %v247 = vrot.slane %v240, %v246
    %v249 = vunpack.c.l.s4 1983009808
    %v250 = vunpack.c.0.s8 %v249
    %v251 = vlaneseq
    %v252 = vshrl.u32 %v251, 7
    %v253 = vsub.s32 %v250, %v252
    %v254 = vrot.slane %v236, %v253
    %v255 = vcombine.low %v237, %v237
    %v257 = vunpack.c.l.s4 1983009808
    %v258 = vunpack.c.0.s8 %v257
    %v259 = vlaneseq
    %v260 = vshrl.u32 %v259, 7
    %v261 = vsub.s32 %v258, %v260
    %v262 = vrot.slane %v255, %v261
    %263 = vrot.lane.b32.xlu0 %v247, 16
    %v264 = vpop.permute.xlu0 %263
    %265 = vrot.lane.b32.xlu0 %v254, 16
    %v266 = vpop.permute.xlu0 %265
    %267 = vrot.lane.b32.xlu0 %v262, 16
    %v268 = vpop.permute.xlu0 %267
    %v269 = vrot.slane %v264, 4
    %v270 = vrot.slane %v266, 4
    %v271 = vrot.slane %v268, 4
    %v272 = vsel %vm152, %v269, %v270
    %vm273 = vcmask 130048
    %v274 = vsel %vm273, %v264, %v272
    %v275 = vsel %vm152, %v270, %v271
    %v276 = vsel %vm273, %v266, %v275
    %279 = vst [vmem:[#allocation3] sm:$0xcc] %v274
    %280 = vst [vmem:[#allocation3 + $0x8] sm:$0xcc] %v276
    %v281 = vld [vmem:[#allocation2] sm:$0xff]
    %v282 = vld [vmem:[#allocation2 + $0x8] sm:$0x3]
    %v283 = vld [vmem:[%s1] sm:$0x22]
    %v284 = vld [vmem:[%s1 + $0x8] sm:$0x22]
    %v287 = vunpack.c.l.b16 %v283
    %v288 = vunpack.c.h.b16 %v283
    %v289 = vunpack.c.l.b16 %v284
    %v290 = vunpack.c.h.b16 %v284
    %v291 = vpack.c.b16 %v287, %v287
    %v292 = vpack.c.b16 %v288, %v288
    %v293 = vpack.c.b16 %v289, %v289
    %v294 = vpack.c.b16 %v290, %v290
    %v296 = vpack.i.b16 %v291, %v291
    %v298 = vlaneseq
    %v299 = vshrl.u32 %v298, 7
    %v300 = vsub.s32 1, %v299
    %v301 = vrot.slane %v296, %v300
    %v303 = vpack.i.b16 %v292, %v292
    %v305 = vlaneseq
    %v306 = vshrl.u32 %v305, 7
    %v307 = vsub.s32 1, %v306
    %v308 = vrot.slane %v303, %v307
    %v310 = vpack.i.b16 %v293, %v293
    %v312 = vlaneseq
    %v313 = vshrl.u32 %v312, 7
    %v314 = vsub.s32 1, %v313
    %v315 = vrot.slane %v310, %v314
    %v317 = vpack.i.b16 %v294, %v294
    %v319 = vlaneseq
    %v320 = vshrl.u32 %v319, 7
    %v321 = vsub.s32 1, %v320
    %v322 = vrot.slane %v317, %v321
    %v327 = vcombine.low %v301, %v308
    %v328 = vcombine.low %v315, %v322
    %v330 = vunpack.c.l.s4 1983009808
    %v331 = vunpack.c.0.s8 %v330
    %v332 = vlaneseq
    %v333 = vshrl.u32 %v332, 7
    %v334 = vsub.s32 %v331, %v333
    %v335 = vrot.slane %v327, %v334
    %v337 = vunpack.c.l.s4 1983009808
    %v338 = vunpack.c.0.s8 %v337
    %v339 = vlaneseq
    %v340 = vshrl.u32 %v339, 7
    %v341 = vsub.s32 %v338, %v340
    %v342 = vrot.slane %v328, %v341
    %v343 = vcombine.low %v335, %v342
    %344 = vrot.lane.b32.xlu0 %v343, 113
    %v345 = vpop.permute.xlu0 %344
    %v346 = vrot.slane %v345, 6
    %vm347 = vcmask 924672
    %v348 = vsel %vm347, %v346, %v345
    %v351 = vmul.bf16 %v281, %v348
    %v352 = vmul.bf16 %v282, %v346
    %v355 = vcombine.high %v351, %v351
    %v357 = vunpack.c.l.s4 1983009808
    %v358 = vunpack.c.0.s8 %v357
    %v359 = vlaneseq
    %v360 = vshrl.u32 %v359, 7
    %v361 = vsub.s32 %v358, %v360
    %v362 = vrot.slane %v351, %v361
    %v364 = vunpack.c.l.s4 1983009808
    %v365 = vunpack.c.0.s8 %v364
    %v366 = vlaneseq
    %v367 = vshrl.u32 %v366, 7
    %v368 = vsub.s32 %v365, %v367
    %v369 = vrot.slane %v355, %v368
    %v371 = vunpack.c.l.s4 1983009808
    %v372 = vunpack.c.0.s8 %v371
    %v373 = vlaneseq
    %v374 = vshrl.u32 %v373, 7
    %v375 = vsub.s32 %v372, %v374
    %v376 = vrot.slane %v352, %v375
    %377 = vrot.lane.b32.xlu0 %v362, 15
    %v378 = vpop.permute.xlu0 %377
    %379 = vrot.lane.b32.xlu0 %v369, 15
    %v380 = vpop.permute.xlu0 %379
    %381 = vrot.lane.b32.xlu0 %v376, 15
    %v382 = vpop.permute.xlu0 %381
    %v383 = vrot.slane %v378, 4
    %v384 = vrot.slane %v380, 4
    %v385 = vrot.slane %v382, 4
    %v386 = vsel %vm152, %v383, %v384
    %vm387 = vcmask 121856
    %v388 = vsel %vm387, %v378, %v386
    %v389 = vsel %vm152, %v384, %v385
    %v390 = vsel %vm387, %v380, %v389
    %393 = vst [vmem:[#allocation3 + $0x10] sm:$0x33] %v388
    %394 = vst [vmem:[#allocation3 + $0x18] sm:$0x33] %v390
    %v395 = vld [vmem:[#allocation2] sm:$0xff]
    %v396 = vld [vmem:[#allocation2 + $0x8] sm:$0x3]
    %v397 = vld [vmem:[%s1] sm:$0x22]
    %v398 = vld [vmem:[%s1 + $0x8] sm:$0x22]
    %v401 = vunpack.c.l.b16 %v397
    %v402 = vunpack.c.h.b16 %v397
    %v403 = vunpack.c.l.b16 %v398
    %v404 = vunpack.c.h.b16 %v398
    %v405 = vpack.c.b16 %v401, %v401
    %v406 = vpack.c.b16 %v402, %v402
    %v407 = vpack.c.b16 %v403, %v403
    %v408 = vpack.c.b16 %v404, %v404
    %v410 = vshrl.u32 %v405, 16
    %v411 = vpack.i.b16 %v410, %v410
    %v413 = vlaneseq
    %v414 = vshrl.u32 %v413, 7
    %v415 = vsub.s32 1, %v414
    %v416 = vrot.slane %v411, %v415
    %v418 = vshrl.u32 %v406, 16
    %v419 = vpack.i.b16 %v418, %v418
    %v421 = vlaneseq
    %v422 = vshrl.u32 %v421, 7
    %v423 = vsub.s32 1, %v422
    %v424 = vrot.slane %v419, %v423
    %v426 = vshrl.u32 %v407, 16
    %v427 = vpack.i.b16 %v426, %v426
    %v429 = vlaneseq
    %v430 = vshrl.u32 %v429, 7
    %v431 = vsub.s32 1, %v430
    %v432 = vrot.slane %v427, %v431
    %v434 = vshrl.u32 %v408, 16
    %v435 = vpack.i.b16 %v434, %v434
    %v437 = vlaneseq
    %v438 = vshrl.u32 %v437, 7
    %v439 = vsub.s32 1, %v438
    %v440 = vrot.slane %v435, %v439
    %v445 = vcombine.low %v416, %v424
    %v446 = vcombine.low %v432, %v440
    %v448 = vunpack.c.l.s4 1983009808
    %v449 = vunpack.c.0.s8 %v448
    %v450 = vlaneseq
    %v451 = vshrl.u32 %v450, 7
    %v452 = vsub.s32 %v449, %v451
    %v453 = vrot.slane %v445, %v452
    %v455 = vunpack.c.l.s4 1983009808
    %v456 = vunpack.c.0.s8 %v455
    %v457 = vlaneseq
    %v458 = vshrl.u32 %v457, 7
    %v459 = vsub.s32 %v456, %v458
    %v460 = vrot.slane %v446, %v459
    %v461 = vcombine.low %v453, %v460
    %462 = vrot.lane.b32.xlu0 %v461, 127
    %v463 = vpop.permute.xlu0 %462
    %v464 = vrot.slane %v463, 6
    %vm465 = vcmask 1039360
    %v466 = vsel %vm465, %v464, %v463
    %v469 = vmul.bf16 %v395, %v466
    %v470 = vmul.bf16 %v396, %v464
    %v473 = vcombine.low %v469, %v469
    %v475 = vunpack.c.l.s4 1983009808
    %v476 = vunpack.c.0.s8 %v475
    %v477 = vlaneseq
    %v478 = vshrl.u32 %v477, 7
    %v479 = vsub.s32 %v476, %v478
    %v480 = vrot.slane %v473, %v479
    %v482 = vunpack.c.l.s4 1983009808
    %v483 = vunpack.c.0.s8 %v482
    %v484 = vlaneseq
    %v485 = vshrl.u32 %v484, 7
    %v486 = vsub.s32 %v483, %v485
    %v487 = vrot.slane %v469, %v486
    %v488 = vcombine.low %v470, %v470
    %v490 = vunpack.c.l.s4 1983009808
    %v491 = vunpack.c.0.s8 %v490
    %v492 = vlaneseq
    %v493 = vshrl.u32 %v492, 7
    %v494 = vsub.s32 %v491, %v493
    %v495 = vrot.slane %v488, %v494
    %496 = vrot.lane.b32.xlu0 %v480, 1
    %v497 = vpop.permute.xlu0 %496
    %498 = vrot.lane.b32.xlu0 %v487, 1
    %v499 = vpop.permute.xlu0 %498
    %500 = vrot.lane.b32.xlu0 %v495, 1
    %v501 = vpop.permute.xlu0 %500
    %v502 = vrot.slane %v497, 4
    %v503 = vrot.slane %v499, 4
    %v504 = vrot.slane %v501, 4
    %v505 = vsel %vm152, %v502, %v503
    %vm506 = vcmask 7168
    %v507 = vsel %vm506, %v497, %v505
    %v508 = vsel %vm152, %v503, %v504
    %v509 = vsel %vm506, %v499, %v508
    %512 = vst [vmem:[#allocation3 + $0x10] sm:$0xcc] %v507
    %513 = vst [vmem:[#allocation3 + $0x18] sm:$0xcc] %v509
    %v514 = vld [vmem:[#allocation2 + $0x2] sm:$0xff]
    %v515 = vld [vmem:[%s1] sm:$0x44]
    %v516 = vld [vmem:[%s1 + $0x8] sm:$0x44]
    %v519 = vunpack.c.l.b16 %v515
    %v520 = vunpack.c.h.b16 %v515
    %v521 = vunpack.c.l.b16 %v516
    %v522 = vunpack.c.h.b16 %v516
    %v523 = vpack.c.b16 %v519, %v519
    %v524 = vpack.c.b16 %v520, %v520
    %v525 = vpack.c.b16 %v521, %v521
    %v526 = vpack.c.b16 %v522, %v522
    %v528 = vpack.i.b16 %v523, %v523
    %v530 = vlaneseq
    %v531 = vshrl.u32 %v530, 7
    %v532 = vsub.s32 2, %v531
    %v533 = vrot.slane %v528, %v532
    %v535 = vpack.i.b16 %v524, %v524
    %v537 = vlaneseq
    %v538 = vshrl.u32 %v537, 7
    %v539 = vsub.s32 2, %v538
    %v540 = vrot.slane %v535, %v539
    %v542 = vpack.i.b16 %v525, %v525
    %v544 = vlaneseq
    %v545 = vshrl.u32 %v544, 7
    %v546 = vsub.s32 2, %v545
    %v547 = vrot.slane %v542, %v546
    %v549 = vpack.i.b16 %v526, %v526
    %v551 = vlaneseq
    %v552 = vshrl.u32 %v551, 7
    %v553 = vsub.s32 2, %v552
    %v554 = vrot.slane %v549, %v553
    %v559 = vcombine.low %v533, %v540
    %v560 = vcombine.low %v547, %v554
    %v562 = vunpack.c.l.s4 1983009808
    %v563 = vunpack.c.0.s8 %v562
    %v564 = vlaneseq
    %v565 = vshrl.u32 %v564, 7
    %v566 = vsub.s32 %v563, %v565
    %v567 = vrot.slane %v559, %v566
    %v569 = vunpack.c.l.s4 1983009808
    %v570 = vunpack.c.0.s8 %v569
    %v571 = vlaneseq
    %v572 = vshrl.u32 %v571, 7
    %v573 = vsub.s32 %v570, %v572
    %v574 = vrot.slane %v560, %v573
    %v575 = vcombine.low %v567, %v574
    %v577 = vmul.bf16 %v514, %v575
    %v579 = vcombine.high %v577, %v577
    %v581 = vunpack.c.l.s4 1983009808
    %v582 = vunpack.c.0.s8 %v581
    %v583 = vlaneseq
    %v584 = vshrl.u32 %v583, 7
    %v585 = vsub.s32 %v582, %v584
    %v586 = vrot.slane %v577, %v585
    %v588 = vunpack.c.l.s4 1983009808
    %v589 = vunpack.c.0.s8 %v588
    %v590 = vlaneseq
    %v591 = vshrl.u32 %v590, 7
    %v592 = vsub.s32 %v589, %v591
    %v593 = vrot.slane %v579, %v592
    %596 = vst [vmem:[#allocation3 + $0x20] sm:$0x33] %v586
    %597 = vst [vmem:[#allocation3 + $0x28] sm:$0x33] %v593
    %v598 = vld [vmem:[#allocation2 + $0x2] sm:$0xff]
    %v599 = vld [vmem:[#allocation2 + $0xa] sm:$0x3]
    %v600 = vld [vmem:[%s1] sm:$0x44]
    %v601 = vld [vmem:[%s1 + $0x8] sm:$0x44]
    %v604 = vunpack.c.l.b16 %v600
    %v605 = vunpack.c.h.b16 %v600
    %v606 = vunpack.c.l.b16 %v601
    %v607 = vunpack.c.h.b16 %v601
    %v608 = vpack.c.b16 %v604, %v604
    %v609 = vpack.c.b16 %v605, %v605
    %v610 = vpack.c.b16 %v606, %v606
    %v611 = vpack.c.b16 %v607, %v607
    %v613 = vshrl.u32 %v608, 16
    %v614 = vpack.i.b16 %v613, %v613
    %v616 = vlaneseq
    %v617 = vshrl.u32 %v616, 7
    %v618 = vsub.s32 2, %v617
    %v619 = vrot.slane %v614, %v618
    %v621 = vshrl.u32 %v609, 16
    %v622 = vpack.i.b16 %v621, %v621
    %v624 = vlaneseq
    %v625 = vshrl.u32 %v624, 7
    %v626 = vsub.s32 2, %v625
    %v627 = vrot.slane %v622, %v626
    %v629 = vshrl.u32 %v610, 16
    %v630 = vpack.i.b16 %v629, %v629
    %v632 = vlaneseq
    %v633 = vshrl.u32 %v632, 7
    %v634 = vsub.s32 2, %v633
    %v635 = vrot.slane %v630, %v634
    %v637 = vshrl.u32 %v611, 16
    %v638 = vpack.i.b16 %v637, %v637
    %v640 = vlaneseq
    %v641 = vshrl.u32 %v640, 7
    %v642 = vsub.s32 2, %v641
    %v643 = vrot.slane %v638, %v642
    %v648 = vcombine.low %v619, %v627
    %v649 = vcombine.low %v635, %v643
    %v651 = vunpack.c.l.s4 1983009808
    %v652 = vunpack.c.0.s8 %v651
    %v653 = vlaneseq
    %v654 = vshrl.u32 %v653, 7
    %v655 = vsub.s32 %v652, %v654
    %v656 = vrot.slane %v648, %v655
    %v658 = vunpack.c.l.s4 1983009808
    %v659 = vunpack.c.0.s8 %v658
    %v660 = vlaneseq
    %v661 = vshrl.u32 %v660, 7
    %v662 = vsub.s32 %v659, %v661
    %v663 = vrot.slane %v649, %v662
    %v664 = vcombine.low %v656, %v663
    %665 = vrot.lane.b32.xlu0 %v664, 1
    %v666 = vpop.permute.xlu0 %665
    %v667 = vrot.slane %v666, 6
    %v668 = vsel %vm506, %v667, %v666
    %v671 = vmul.bf16 %v598, %v668
    %v672 = vmul.bf16 %v599, %v667
    %v675 = vcombine.low %v671, %v671
    %v677 = vunpack.c.l.s4 1983009808
    %v678 = vunpack.c.0.s8 %v677
    %v679 = vlaneseq
    %v680 = vshrl.u32 %v679, 7
    %v681 = vsub.s32 %v678, %v680
    %v682 = vrot.slane %v675, %v681
    %v684 = vunpack.c.l.s4 1983009808
    %v685 = vunpack.c.0.s8 %v684
    %v686 = vlaneseq
    %v687 = vshrl.u32 %v686, 7
    %v688 = vsub.s32 %v685, %v687
    %v689 = vrot.slane %v671, %v688
    %v690 = vcombine.low %v672, %v672
    %v692 = vunpack.c.l.s4 1983009808
    %v693 = vunpack.c.0.s8 %v692
    %v694 = vlaneseq
    %v695 = vshrl.u32 %v694, 7
    %v696 = vsub.s32 %v693, %v695
    %v697 = vrot.slane %v690, %v696
    %698 = vrot.lane.b32.xlu0 %v682, 127
    %v699 = vpop.permute.xlu0 %698
    %700 = vrot.lane.b32.xlu0 %v689, 127
    %v701 = vpop.permute.xlu0 %700
    %702 = vrot.lane.b32.xlu0 %v697, 127
    %v703 = vpop.permute.xlu0 %702
    %v704 = vrot.slane %v699, 4
    %v705 = vrot.slane %v701, 4
    %v706 = vrot.slane %v703, 4
    %v707 = vsel %vm152, %v704, %v705
    %v708 = vsel %vm465, %v699, %v707
    %v709 = vsel %vm152, %v705, %v706
    %v710 = vsel %vm465, %v701, %v709
    %713 = vst [vmem:[#allocation3 + $0x20] sm:$0xcc] %v708
    %714 = vst [vmem:[#allocation3 + $0x28] sm:$0xcc] %v710
    %v715 = vld [vmem:[#allocation2 + $0x2] sm:$0xff]
    %v716 = vld [vmem:[#allocation2 + $0xa] sm:$0x3]
    %v717 = vld [vmem:[%s1] sm:$0x88]
    %v718 = vld [vmem:[%s1 + $0x8] sm:$0x88]
    %v721 = vunpack.c.l.b16 %v717
    %v722 = vunpack.c.h.b16 %v717
    %v723 = vunpack.c.l.b16 %v718
    %v724 = vunpack.c.h.b16 %v718
    %v725 = vpack.c.b16 %v721, %v721
    %v726 = vpack.c.b16 %v722, %v722
    %v727 = vpack.c.b16 %v723, %v723
    %v728 = vpack.c.b16 %v724, %v724
    %v730 = vpack.i.b16 %v725, %v725
    %v732 = vlaneseq
    %v733 = vshrl.u32 %v732, 7
    %v734 = vsub.s32 3, %v733
    %v735 = vrot.slane %v730, %v734
    %v737 = vpack.i.b16 %v726, %v726
    %v739 = vlaneseq
    %v740 = vshrl.u32 %v739, 7
    %v741 = vsub.s32 3, %v740
    %v742 = vrot.slane %v737, %v741
    %v744 = vpack.i.b16 %v727, %v727
    %v746 = vlaneseq
    %v747 = vshrl.u32 %v746, 7
    %v748 = vsub.s32 3, %v747
    %v749 = vrot.slane %v744, %v748
    %v751 = vpack.i.b16 %v728, %v728
    %v753 = vlaneseq
    %v754 = vshrl.u32 %v753, 7
    %v755 = vsub.s32 3, %v754
    %v756 = vrot.slane %v751, %v755
    %v761 = vcombine.low %v735, %v742
    %v762 = vcombine.low %v749, %v756
    %v764 = vunpack.c.l.s4 1983009808
    %v765 = vunpack.c.0.s8 %v764
    %v766 = vlaneseq
    %v767 = vshrl.u32 %v766, 7
    %v768 = vsub.s32 %v765, %v767
    %v769 = vrot.slane %v761, %v768
    %v771 = vunpack.c.l.s4 1983009808
    %v772 = vunpack.c.0.s8 %v771
    %v773 = vlaneseq
    %v774 = vshrl.u32 %v773, 7
    %v775 = vsub.s32 %v772, %v774
    %v776 = vrot.slane %v762, %v775
    %v777 = vcombine.low %v769, %v776
    %778 = vrot.lane.b32.xlu0 %v777, 15
    %v779 = vpop.permute.xlu0 %778
    %v780 = vrot.slane %v779, 6
    %v781 = vsel %vm387, %v780, %v779
    %v784 = vmul.bf16 %v715, %v781
    %v785 = vmul.bf16 %v716, %v780
    %v788 = vcombine.high %v784, %v784
    %v790 = vunpack.c.l.s4 1983009808
    %v791 = vunpack.c.0.s8 %v790
    %v792 = vlaneseq
    %v793 = vshrl.u32 %v792, 7
    %v794 = vsub.s32 %v791, %v793
    %v795 = vrot.slane %v784, %v794
    %v797 = vunpack.c.l.s4 1983009808
    %v798 = vunpack.c.0.s8 %v797
    %v799 = vlaneseq
    %v800 = vshrl.u32 %v799, 7
    %v801 = vsub.s32 %v798, %v800
    %v802 = vrot.slane %v788, %v801
    %v804 = vunpack.c.l.s4 1983009808
    %v805 = vunpack.c.0.s8 %v804
    %v806 = vlaneseq
    %v807 = vshrl.u32 %v806, 7
    %v808 = vsub.s32 %v805, %v807
    %v809 = vrot.slane %v785, %v808
    %810 = vrot.lane.b32.xlu0 %v795, 113
    %v811 = vpop.permute.xlu0 %810
    %812 = vrot.lane.b32.xlu0 %v802, 113
    %v813 = vpop.permute.xlu0 %812
    %814 = vrot.lane.b32.xlu0 %v809, 113
    %v815 = vpop.permute.xlu0 %814
    %v816 = vrot.slane %v811, 4
    %v817 = vrot.slane %v813, 4
    %v818 = vrot.slane %v815, 4
    %v819 = vsel %vm152, %v816, %v817
    %v820 = vsel %vm347, %v811, %v819
    %v821 = vsel %vm152, %v817, %v818
    %v822 = vsel %vm347, %v813, %v821
    %825 = vst [vmem:[#allocation3 + $0x30] sm:$0x33] %v820
    %826 = vst [vmem:[#allocation3 + $0x38] sm:$0x33] %v822
    %v827 = vld [vmem:[#allocation2 + $0x2] sm:$0xff]
    %v828 = vld [vmem:[#allocation2 + $0xa] sm:$0x3]
    %v829 = vld [vmem:[%s1] sm:$0x88]
    %v830 = vld [vmem:[%s1 + $0x8] sm:$0x88]
    %v833 = vunpack.c.l.b16 %v829
    %v834 = vunpack.c.h.b16 %v829
    %v835 = vunpack.c.l.b16 %v830
    %v836 = vunpack.c.h.b16 %v830
    %v837 = vpack.c.b16 %v833, %v833
    %v838 = vpack.c.b16 %v834, %v834
    %v839 = vpack.c.b16 %v835, %v835
    %v840 = vpack.c.b16 %v836, %v836
    %v842 = vshrl.u32 %v837, 16
    %v843 = vpack.i.b16 %v842, %v842
    %v845 = vlaneseq
    %v846 = vshrl.u32 %v845, 7
    %v847 = vsub.s32 3, %v846
    %v848 = vrot.slane %v843, %v847
    %v850 = vshrl.u32 %v838, 16
    %v851 = vpack.i.b16 %v850, %v850
    %v853 = vlaneseq
    %v854 = vshrl.u32 %v853, 7
    %v855 = vsub.s32 3, %v854
    %v856 = vrot.slane %v851, %v855
    %v858 = vshrl.u32 %v839, 16
    %v859 = vpack.i.b16 %v858, %v858
    %v861 = vlaneseq
    %v862 = vshrl.u32 %v861, 7
    %v863 = vsub.s32 3, %v862
    %v864 = vrot.slane %v859, %v863
    %v866 = vshrl.u32 %v840, 16
    %v867 = vpack.i.b16 %v866, %v866
    %v869 = vlaneseq
    %v870 = vshrl.u32 %v869, 7
    %v871 = vsub.s32 3, %v870
    %v872 = vrot.slane %v867, %v871
    %v877 = vcombine.low %v848, %v856
    %v878 = vcombine.low %v864, %v872
    %v880 = vunpack.c.l.s4 1983009808
    %v881 = vunpack.c.0.s8 %v880
    %v882 = vlaneseq
    %v883 = vshrl.u32 %v882, 7
    %v884 = vsub.s32 %v881, %v883
    %v885 = vrot.slane %v877, %v884
    %v887 = vunpack.c.l.s4 1983009808
    %v888 = vunpack.c.0.s8 %v887
    %v889 = vlaneseq
    %v890 = vshrl.u32 %v889, 7
    %v891 = vsub.s32 %v888, %v890
    %v892 = vrot.slane %v878, %v891
    %v893 = vcombine.low %v885, %v892
    %894 = vrot.lane.b32.xlu0 %v893, 16
    %v895 = vpop.permute.xlu0 %894
    %v896 = vrot.slane %v895, 6
    %v897 = vsel %vm273, %v896, %v895
    %v900 = vmul.bf16 %v827, %v897
    %v901 = vmul.bf16 %v828, %v896
    %v904 = vcombine.low %v900, %v900
    %v906 = vunpack.c.l.s4 1983009808
    %v907 = vunpack.c.0.s8 %v906
    %v908 = vlaneseq
    %v909 = vshrl.u32 %v908, 7
    %v910 = vsub.s32 %v907, %v909
    %v911 = vrot.slane %v904, %v910
    %v913 = vunpack.c.l.s4 1983009808
    %v914 = vunpack.c.0.s8 %v913
    %v915 = vlaneseq
    %v916 = vshrl.u32 %v915, 7
    %v917 = vsub.s32 %v914, %v916
    %v918 = vrot.slane %v900, %v917
    %v919 = vcombine.low %v901, %v901
    %v921 = vunpack.c.l.s4 1983009808
    %v922 = vunpack.c.0.s8 %v921
    %v923 = vlaneseq
    %v924 = vshrl.u32 %v923, 7
    %v925 = vsub.s32 %v922, %v924
    %v926 = vrot.slane %v919, %v925
    %927 = vrot.lane.b32.xlu0 %v911, 112
    %v928 = vpop.permute.xlu0 %927
    %929 = vrot.lane.b32.xlu0 %v918, 112
    %v930 = vpop.permute.xlu0 %929
    %931 = vrot.lane.b32.xlu0 %v926, 112
    %v932 = vpop.permute.xlu0 %931
    %v933 = vrot.slane %v928, 4
    %v934 = vrot.slane %v930, 4
    %v935 = vrot.slane %v932, 4
    %v936 = vsel %vm152, %v933, %v934
    %v937 = vsel %vm232, %v928, %v936
    %v938 = vsel %vm152, %v934, %v935
    %v939 = vsel %vm232, %v930, %v938
    %942 = vst [vmem:[#allocation3 + $0x30] sm:$0xcc] %v937
    %943 = vst [vmem:[#allocation3 + $0x38] sm:$0xcc] %v939
    %v944 = vld [vmem:[#allocation2 + $0x2] sm:$0xff]
    %v945 = vld [vmem:[#allocation2 + $0xa] sm:$0x3]
    %v946 = vld [vmem:[%s1 + $0x10] sm:$0x11]
    %v947 = vld [vmem:[%s1 + $0x18] sm:$0x11]
    %v950 = vunpack.c.l.b16 %v946
    %v951 = vunpack.c.h.b16 %v946
    %v952 = vunpack.c.l.b16 %v947
    %v953 = vunpack.c.h.b16 %v947
    %v954 = vpack.c.b16 %v950, %v950
    %v955 = vpack.c.b16 %v951, %v951
    %v956 = vpack.c.b16 %v952, %v952
    %v957 = vpack.c.b16 %v953, %v953
    %v959 = vpack.i.b16 %v954, %v954
    %v961 = vlaneseq
    %v962 = vshrl.u32 %v961, 7
    %v963 = vsub.s32 0, %v962
    %v964 = vrot.slane %v959, %v963
    %v966 = vpack.i.b16 %v955, %v955
    %v968 = vlaneseq
    %v969 = vshrl.u32 %v968, 7
    %v970 = vsub.s32 0, %v969
    %v971 = vrot.slane %v966, %v970
    %v973 = vpack.i.b16 %v956, %v956
    %v975 = vlaneseq
    %v976 = vshrl.u32 %v975, 7
    %v977 = vsub.s32 0, %v976
    %v978 = vrot.slane %v973, %v977
    %v980 = vpack.i.b16 %v957, %v957
    %v982 = vlaneseq
    %v983 = vshrl.u32 %v982, 7
    %v984 = vsub.s32 0, %v983
    %v985 = vrot.slane %v980, %v984
    %v990 = vcombine.low %v964, %v971
    %v991 = vcombine.low %v978, %v985
    %v993 = vunpack.c.l.s4 1983009808
    %v994 = vunpack.c.0.s8 %v993
    %v995 = vlaneseq
    %v996 = vshrl.u32 %v995, 7
    %v997 = vsub.s32 %v994, %v996
    %v998 = vrot.slane %v990, %v997
    %v1000 = vunpack.c.l.s4 1983009808
    %v1001 = vunpack.c.0.s8 %v1000
    %v1002 = vlaneseq
    %v1003 = vshrl.u32 %v1002, 7
    %v1004 = vsub.s32 %v1001, %v1003
    %v1005 = vrot.slane %v991, %v1004
    %v1006 = vcombine.low %v998, %v1005
    %1007 = vrot.lane.b32.xlu0 %v1006, 17
    %v1008 = vpop.permute.xlu0 %1007
    %v1009 = vrot.slane %v1008, 6
    %v1010 = vsel %vm154, %v1009, %v1008
    %v1013 = vmul.bf16 %v944, %v1010
    %v1014 = vmul.bf16 %v945, %v1009
    %v1017 = vcombine.high %v1013, %v1013
    %v1019 = vunpack.c.l.s4 1983009808
    %v1020 = vunpack.c.0.s8 %v1019
    %v1021 = vlaneseq
    %v1022 = vshrl.u32 %v1021, 7
    %v1023 = vsub.s32 %v1020, %v1022
    %v1024 = vrot.slane %v1013, %v1023
    %v1026 = vunpack.c.l.s4 1983009808
    %v1027 = vunpack.c.0.s8 %v1026
    %v1028 = vlaneseq
    %v1029 = vshrl.u32 %v1028, 7
    %v1030 = vsub.s32 %v1027, %v1029
    %v1031 = vrot.slane %v1017, %v1030
    %v1033 = vunpack.c.l.s4 1983009808
    %v1034 = vunpack.c.0.s8 %v1033
    %v1035 = vlaneseq
    %v1036 = vshrl.u32 %v1035, 7
    %v1037 = vsub.s32 %v1034, %v1036
    %v1038 = vrot.slane %v1014, %v1037
    %1039 = vrot.lane.b32.xlu0 %v1024, 111
    %v1040 = vpop.permute.xlu0 %1039
    %1041 = vrot.lane.b32.xlu0 %v1031, 111
    %v1042 = vpop.permute.xlu0 %1041
    %1043 = vrot.lane.b32.xlu0 %v1038, 111
    %v1044 = vpop.permute.xlu0 %1043
    %v1045 = vrot.slane %v1040, 4
    %v1046 = vrot.slane %v1042, 4
    %v1047 = vrot.slane %v1044, 4
    %v1048 = vsel %vm152, %v1045, %v1046
    %v1049 = vsel %vm113, %v1040, %v1048
    %v1050 = vsel %vm152, %v1046, %v1047
    %v1051 = vsel %vm113, %v1042, %v1050
    %1054 = vst [vmem:[#allocation3 + $0x40] sm:$0x33] %v1049
    %1055 = vst [vmem:[#allocation3 + $0x48] sm:$0x33] %v1051
    %v1056 = vld [vmem:[%s2] sm:$0xf]
    %v1057 = vld [vmem:[#allocation3] sm:$0xff]
    %v1058 = vld [vmem:[#allocation3 + $0x8] sm:$0xff]
    %v1059 = vld [vmem:[#allocation3 + $0x10] sm:$0xff]
    %v1060 = vld [vmem:[#allocation3 + $0x18] sm:$0xff]
    %v1061 = vld [vmem:[#allocation3 + $0x20] sm:$0xff]
    %v1062 = vld [vmem:[#allocation3 + $0x28] sm:$0xff]
    %v1063 = vld [vmem:[#allocation3 + $0x30] sm:$0xff]
    %v1064 = vld [vmem:[#allocation3 + $0x38] sm:$0xff]
    %v1065 = vld [vmem:[#allocation3 + $0x40] sm:$0x33]
    %v1066 = vld [vmem:[#allocation3 + $0x48] sm:$0x33]
    %v1077 = vunpack.c.l.b16 %v1057
    %v1078 = vunpack.c.h.b16 %v1057
    %v1079 = vunpack.c.l.b16 %v1058
    %v1080 = vunpack.c.h.b16 %v1058
    %v1081 = vunpack.c.l.b16 %v1059
    %v1082 = vunpack.c.h.b16 %v1059
    %v1083 = vunpack.c.l.b16 %v1060
    %v1084 = vunpack.c.h.b16 %v1060
    %v1085 = vunpack.c.l.b16 %v1061
    %v1086 = vunpack.c.h.b16 %v1061
    %v1087 = vunpack.c.l.b16 %v1062
    %v1088 = vunpack.c.h.b16 %v1062
    %v1089 = vunpack.c.l.b16 %v1063
    %v1090 = vunpack.c.h.b16 %v1063
    %v1091 = vunpack.c.l.b16 %v1064
    %v1092 = vunpack.c.h.b16 %v1064
    %v1093 = vunpack.c.l.b16 %v1065
    %v1094 = vunpack.c.h.b16 %v1065
    %v1095 = vunpack.c.l.b16 %v1066
    %v1096 = vunpack.c.h.b16 %v1066
    %v1097 = vpack.c.b16 %v1081, %v1077
    %v1098 = vpack.c.b16 %v1082, %v1078
    %v1099 = vpack.c.b16 %v1083, %v1079
    %v1100 = vpack.c.b16 %v1084, %v1080
    %v1101 = vpack.c.b16 %v1089, %v1085
    %v1102 = vpack.c.b16 %v1090, %v1086
    %v1103 = vpack.c.b16 %v1091, %v1087
    %v1104 = vpack.c.b16 %v1092, %v1088
    %v1105 = vpack.c.b16 %v1093, %v1093
    %v1106 = vpack.c.b16 %v1094, %v1094
    %v1107 = vpack.c.b16 %v1095, %v1095
    %v1108 = vpack.c.b16 %v1096, %v1096
    %vm1117 = vcmask 293888
    %v1119 = vsel %vm1117, %v1056, 0
    %vm1121 = vcmask 1041408
    %v1123 = vsel %vm1121, %v1105, 0
    %v1126 = vsel %vm1121, %v1106, 0
    %v1129 = vsel %vm1121, %v1107, 0
    %v1132 = vsel %vm1121, %v1108, 0
    %1134 = vmatprep.subr.bf16.mxu0 %v1098
    %1135 = vmatpush1.bf16.msra.mxu0 %v1097
    %1136 = vmatprep.subr.bf16.mxu0 %v1102
    %1137 = vmatpush1.bf16.msra.mxu0 %v1101
    %1138 = vmatprep.subr.bf16.mxu0 %v1126
    %1139 = vmatpush1.bf16.msra.mxu0 %v1123
    %1140 = vmatprep.subr.bf16.mxu0 0
    %1141 = vmatpush1.bf16.msra.mxu0 0
    %1142 = vmatprep.subr.bf16.mxu0 0
    %1143 = vmatpush1.bf16.msra.mxu0 0
    %1144 = vmatprep.subr.bf16.mxu0 0
    %1145 = vmatpush1.bf16.msra.mxu0 0
    %1146 = vmatprep.subr.bf16.mxu0 0
    %1147 = vmatpush1.bf16.msra.mxu0 0
    %1148 = vmatprep.subr.bf16.mxu0 0
    %1149 = vmatpush1.bf16.msra.mxu0 0
    %1150 = vmatprep.subr.bf16.mxu0 0
    %1151 = vmatpush1.bf16.msra.mxu0 0
    %1152 = vmatprep.subr.bf16.mxu0 0
    %1153 = vmatpush1.bf16.msra.mxu0 0
    %1154 = vmatprep.subr.bf16.mxu0 0
    %1155 = vmatpush1.bf16.msra.mxu0 0
    %1156 = vmatprep.subr.bf16.mxu0 0
    %1157 = vmatpush1.bf16.msra.mxu0 0
    %1158 = vmatprep.subr.bf16.mxu0 0
    %1159 = vmatpush1.bf16.msra.mxu0 0
    %1160 = vmatprep.subr.bf16.mxu0 0
    %1161 = vmatpush1.bf16.msra.mxu0 0
    %1162 = vmatprep.subr.bf16.mxu0 0
    %1163 = vmatpush1.bf16.msra.mxu0 0
    %1164 = vmatprep.subr.bf16.mxu0 0
    %1165 = vmatpush1.bf16.msra.mxu0 0
    %1166 = vmatprep.mubr.bf16.mxu0 0
    %1167 = vmatmul.mubr.bf16.gmra.mrb[0].mxu0 %v1119
    %v1168 = vpop.f32.mrb[0].mxu0
    %v1169 = vadd.f32 0.0, %v1168
    %v1170 = vpop.f32.mrb[0].mxu0
    %v1171 = vadd.f32 0.0, %v1170
    %v1172 = vpop.f32.mrb[0].mxu0
    %v1173 = vpop.f32.mrb[0].mxu0
    %1174 = vdwg.mxu0
    %1175 = vmatprep.subr.bf16.mxu0 %v1100
    %1176 = vmatpush1.bf16.msra.mxu0 %v1099
    %1177 = vmatprep.subr.bf16.mxu0 %v1104
    %1178 = vmatpush1.bf16.msra.mxu0 %v1103
    %1179 = vmatprep.subr.bf16.mxu0 %v1132
    %1180 = vmatpush1.bf16.msra.mxu0 %v1129
    %1181 = vmatprep.subr.bf16.mxu0 0
    %1182 = vmatpush1.bf16.msra.mxu0 0
    %1183 = vmatprep.subr.bf16.mxu0 0
    %1184 = vmatpush1.bf16.msra.mxu0 0
    %1185 = vmatprep.subr.bf16.mxu0 0
    %1186 = vmatpush1.bf16.msra.mxu0 0
    %1187 = vmatprep.subr.bf16.mxu0 0
    %1188 = vmatpush1.bf16.msra.mxu0 0
    %1189 = vmatprep.subr.bf16.mxu0 0
    %1190 = vmatpush1.bf16.msra.mxu0 0
    %1191 = vmatprep.subr.bf16.mxu0 0
    %1192 = vmatpush1.bf16.msra.mxu0 0
    %1193 = vmatprep.subr.bf16.mxu0 0
    %1194 = vmatpush1.bf16.msra.mxu0 0
    %1195 = vmatprep.subr.bf16.mxu0 0
    %1196 = vmatpush1.bf16.msra.mxu0 0
    %1197 = vmatprep.subr.bf16.mxu0 0
    %1198 = vmatpush1.bf16.msra.mxu0 0
    %1199 = vmatprep.subr.bf16.mxu0 0
    %1200 = vmatpush1.bf16.msra.mxu0 0
    %1201 = vmatprep.subr.bf16.mxu0 0
    %1202 = vmatpush1.bf16.msra.mxu0 0
    %1203 = vmatprep.subr.bf16.mxu0 0
    %1204 = vmatpush1.bf16.msra.mxu0 0
    %1205 = vmatprep.subr.bf16.mxu0 0
    %1206 = vmatpush1.bf16.msra.mxu0 0
    %1207 = vmatprep.mubr.bf16.mxu0 0
    %1208 = vmatmul.mubr.bf16.gmra.mrb[0].mxu0 %v1119
    %v1209 = vpop.f32.mrb[0].mxu0
    %v1210 = vadd.f32 0.0, %v1209
    %v1211 = vpop.f32.mrb[0].mxu0
    %v1212 = vadd.f32 0.0, %v1211
    %v1213 = vpop.f32.mrb[0].mxu0
    %v1214 = vpop.f32.mrb[0].mxu0
    %1215 = vdwg.mxu0
    %v1216 = vadd.f32 %v1169, %v1171
    %v1217 = vadd.f32 %v1216, %v1210
    %v1218 = vadd.f32 %v1217, %v1212
    %1219 = vadd.xlane.f32.xlu0 %v1218
    %v1220 = vpop.xlane.xlu0 %1219
    %v1221 = vmul.f32 %v1220, 0.001953125
    %v1222 = vmul.f32 %v1169, %v1169
    %v1223 = vmul.f32 %v1171, %v1171
    %v1224 = vmul.f32 %v1210, %v1210
    %v1225 = vmul.f32 %v1212, %v1212
    %v1226 = vadd.f32 %v1222, %v1223
    %v1227 = vadd.f32 %v1226, %v1224
    %v1228 = vadd.f32 %v1227, %v1225
    %1229 = vadd.xlane.f32.xlu0 %v1228
    %v1230 = vpop.xlane.xlu0 %1229
    %v1231 = vmul.f32 %v1230, 0.001953125
    %v1232 = vld [vmem:[%s3] sm:$0xff]
    %v1233 = vmul.f32 %v1221, %v1221
    %v1234 = vsub.f32 %v1231, %v1233
    %v1235 = vadd.f32 %v1234, 1e-05
    %v1236 = vrsqrt.pop %v1235
    %v1237 = vmul.f32 %v1232, %v1236
    %v1238 = vld [vmem:[%s4] sm:$0xff]
    %v1239 = vmul.f32 %v1221, %v1237
    %v1240 = vsub.f32 %v1238, %v1239
    %1242 = vset.pattern.permute.xlu0 0
    %1243 = vperm.xlu0 %1242, %v1237
    %v1244 = vpop.permute.xlu0 %1243
    %v1246 = vmul.f32 %v1169, %v1244
    %v1247 = vmul.f32 %v1171, %v1244
    %v1248 = vmul.f32 %v1210, %v1244
    %v1249 = vmul.f32 %v1212, %v1244
    %1251 = vset.pattern.permute.xlu0 0
    %1252 = vperm.xlu0 %1251, %v1240
    %v1253 = vpop.permute.xlu0 %1252
    %v1255 = vadd.f32 %v1246, %v1253
    %v1256 = vadd.f32 %v1247, %v1253
    %v1257 = vadd.f32 %v1248, %v1253
    %v1258 = vadd.f32 %v1249, %v1253
    %v1259 = vmax.f32 %v1255, 0.0
    %v1260 = vmax.f32 %v1256, 0.0
    %v1261 = vmax.f32 %v1257, 0.0
    %v1262 = vmax.f32 %v1258, 0.0
    %v1263 = vpack.c.bf16 %v1259, %v1259
    %v1264 = vpack.c.bf16 %v1260, %v1260
    %v1265 = vpack.c.bf16 %v1261, %v1261
    %v1266 = vpack.c.bf16 %v1262, %v1262
    %1267 = vst [vmem:[#allocation4] sm:$0xf] 0
    %1268 = vst [vmem:[#allocation4 + $0x14] sm:$0xf] 0
    %v1273 = vunpack.c.l.b16 %v1263
    %v1274 = vunpack.c.l.b16 %v1264
    %v1275 = vunpack.c.l.b16 %v1265
    %v1276 = vunpack.c.l.b16 %v1266
    %v1277 = vpack.c.b16 %v1274, %v1273
    %v1278 = vpack.c.b16 %v1276, %v1275
    %1281 = vst [vmem:[#allocation4 + $0x4] sm:$0xff] %v1277
    %1282 = vst [vmem:[#allocation4 + $0xc] sm:$0xff] %v1278
    %v1283 = vld [vmem:[#allocation4] sm:$0xff]
    %v1284 = vld [vmem:[#allocation4 + $0x8] sm:$0xff]
    %v1285 = vld [vmem:[#allocation4 + $0x10] sm:$0xf]
    %v1286 = vld [vmem:[%s1] sm:$0x11]
    %v1287 = vld [vmem:[%s1 + $0x8] sm:$0x11]
    %v1290 = vunpack.c.l.b16 %v1286
    %v1291 = vunpack.c.h.b16 %v1286
    %v1292 = vunpack.c.l.b16 %v1287
    %v1293 = vunpack.c.h.b16 %v1287
    %v1294 = vpack.c.b16 %v1290, %v1290
    %v1295 = vpack.c.b16 %v1291, %v1291
    %v1296 = vpack.c.b16 %v1292, %v1292
    %v1297 = vpack.c.b16 %v1293, %v1293
    %v1299 = vpack.i.b16 %v1294, %v1294
    %v1301 = vlaneseq
    %v1302 = vshrl.u32 %v1301, 7
    %v1303 = vsub.s32 0, %v1302
    %v1304 = vrot.slane %v1299, %v1303
    %v1306 = vpack.i.b16 %v1295, %v1295
    %v1308 = vlaneseq
    %v1309 = vshrl.u32 %v1308, 7
    %v1310 = vsub.s32 0, %v1309
    %v1311 = vrot.slane %v1306, %v1310
    %v1313 = vpack.i.b16 %v1296, %v1296
    %v1315 = vlaneseq
    %v1316 = vshrl.u32 %v1315, 7
    %v1317 = vsub.s32 0, %v1316
    %v1318 = vrot.slane %v1313, %v1317
    %v1320 = vpack.i.b16 %v1297, %v1297
    %v1322 = vlaneseq
    %v1323 = vshrl.u32 %v1322, 7
    %v1324 = vsub.s32 0, %v1323
    %v1325 = vrot.slane %v1320, %v1324
    %v1330 = vunpack.c.l.b16 %v1304
    %v1331 = vunpack.c.l.b16 %v1311
    %v1332 = vunpack.c.l.b16 %v1318
    %v1333 = vunpack.c.l.b16 %v1325
    %v1334 = vpack.c.b16 %v1331, %v1330
    %v1335 = vpack.c.b16 %v1333, %v1332
    %1336 = vrot.lane.b32.xlu0 %v1334, 111
    %v1337 = vpop.permute.xlu0 %1336
    %1338 = vrot.lane.b32.xlu0 %v1335, 111
    %v1339 = vpop.permute.xlu0 %1338
    %v1340 = vrot.slane %v1337, 4
    %v1341 = vrot.slane %v1339, 4
    %v1342 = vsel %vm113, %v1340, %v1337
    %v1343 = vsel %vm152, %v1340, %v1341
    %v1344 = vsel %vm113, %v1343, %v1339
    %v1348 = vmul.bf16 %v1283, %v1342
    %v1349 = vmul.bf16 %v1284, %v1344
    %v1350 = vmul.bf16 %v1285, %v1341
    %1354 = vrot.lane.b32.xlu0 %v1348, 17
    %v1355 = vpop.permute.xlu0 %1354
    %1356 = vrot.lane.b32.xlu0 %v1349, 17
    %v1357 = vpop.permute.xlu0 %1356
    %1358 = vrot.lane.b32.xlu0 %v1350, 17
    %v1359 = vpop.permute.xlu0 %1358
    %v1360 = vrot.slane %v1355, 4
    %v1361 = vrot.slane %v1357, 4
    %v1362 = vrot.slane %v1359, 4
    %v1363 = vsel %vm152, %v1360, %v1361
    %v1364 = vsel %vm154, %v1355, %v1363
    %v1365 = vsel %vm152, %v1361, %v1362
    %v1366 = vsel %vm154, %v1357, %v1365
    %1369 = vst [vmem:[#allocation5] sm:$0xff] %v1364
    %1370 = vst [vmem:[#allocation5 + $0x8] sm:$0xff] %v1366
    %v1371 = vld [vmem:[#allocation4] sm:$0xff]
    %v1372 = vld [vmem:[#allocation4 + $0x8] sm:$0xff]
    %v1373 = vld [vmem:[#allocation4 + $0x10] sm:$0xf]
    %v1374 = vld [vmem:[%s1] sm:$0x11]
    %v1375 = vld [vmem:[%s1 + $0x8] sm:$0x11]
    %v1378 = vunpack.c.l.b16 %v1374
    %v1379 = vunpack.c.h.b16 %v1374
    %v1380 = vunpack.c.l.b16 %v1375
    %v1381 = vunpack.c.h.b16 %v1375
    %v1382 = vpack.c.b16 %v1378, %v1378
    %v1383 = vpack.c.b16 %v1379, %v1379
    %v1384 = vpack.c.b16 %v1380, %v1380
    %v1385 = vpack.c.b16 %v1381, %v1381
    %v1387 = vshrl.u32 %v1382, 16
    %v1388 = vpack.i.b16 %v1387, %v1387
    %v1390 = vlaneseq
    %v1391 = vshrl.u32 %v1390, 7
    %v1392 = vsub.s32 0, %v1391
    %v1393 = vrot.slane %v1388, %v1392
    %v1395 = vshrl.u32 %v1383, 16
    %v1396 = vpack.i.b16 %v1395, %v1395
    %v1398 = vlaneseq
    %v1399 = vshrl.u32 %v1398, 7
    %v1400 = vsub.s32 0, %v1399
    %v1401 = vrot.slane %v1396, %v1400
    %v1403 = vshrl.u32 %v1384, 16
    %v1404 = vpack.i.b16 %v1403, %v1403
    %v1406 = vlaneseq
    %v1407 = vshrl.u32 %v1406, 7
    %v1408 = vsub.s32 0, %v1407
    %v1409 = vrot.slane %v1404, %v1408
    %v1411 = vshrl.u32 %v1385, 16
    %v1412 = vpack.i.b16 %v1411, %v1411
    %v1414 = vlaneseq
    %v1415 = vshrl.u32 %v1414, 7
    %v1416 = vsub.s32 0, %v1415
    %v1417 = vrot.slane %v1412, %v1416
    %v1422 = vunpack.c.l.b16 %v1393
    %v1423 = vunpack.c.l.b16 %v1401
    %v1424 = vunpack.c.l.b16 %v1409
    %v1425 = vunpack.c.l.b16 %v1417
    %v1426 = vpack.c.b16 %v1423, %v1422
    %v1427 = vpack.c.b16 %v1425, %v1424
    %1428 = vrot.lane.b32.xlu0 %v1426, 112
    %v1429 = vpop.permute.xlu0 %1428
    %1430 = vrot.lane.b32.xlu0 %v1427, 112
    %v1431 = vpop.permute.xlu0 %1430
    %v1432 = vrot.slane %v1429, 4
    %v1433 = vrot.slane %v1431, 4
    %v1434 = vsel %vm232, %v1432, %v1429
    %v1435 = vsel %vm152, %v1432, %v1433
    %v1436 = vsel %vm232, %v1435, %v1431
    %v1440 = vmul.bf16 %v1371, %v1434
    %v1441 = vmul.bf16 %v1372, %v1436
    %v1442 = vmul.bf16 %v1373, %v1433
    %1446 = vrot.lane.b32.xlu0 %v1440, 16
    %v1447 = vpop.permute.xlu0 %1446
    %1448 = vrot.lane.b32.xlu0 %v1441, 16
    %v1449 = vpop.permute.xlu0 %1448
    %1450 = vrot.lane.b32.xlu0 %v1442, 16
    %v1451 = vpop.permute.xlu0 %1450
    %v1452 = vrot.slane %v1447, 4
    %v1453 = vrot.slane %v1449, 4
    %v1454 = vrot.slane %v1451, 4
    %v1455 = vsel %vm152, %v1452, %v1453
    %v1456 = vsel %vm273, %v1447, %v1455
    %v1457 = vsel %vm152, %v1453, %v1454
    %v1458 = vsel %vm273, %v1449, %v1457
    %1461 = vst [vmem:[#allocation5 + $0x10] sm:$0xff] %v1456
    %1462 = vst [vmem:[#allocation5 + $0x18] sm:$0xff] %v1458
    %v1463 = vld [vmem:[#allocation4] sm:$0xff]
    %v1464 = vld [vmem:[#allocation4 + $0x8] sm:$0xff]
    %v1465 = vld [vmem:[#allocation4 + $0x10] sm:$0xf]
    %v1466 = vld [vmem:[%s1] sm:$0x22]
    %v1467 = vld [vmem:[%s1 + $0x8] sm:$0x22]
    %v1470 = vunpack.c.l.b16 %v1466
    %v1471 = vunpack.c.h.b16 %v1466
    %v1472 = vunpack.c.l.b16 %v1467
    %v1473 = vunpack.c.h.b16 %v1467
    %v1474 = vpack.c.b16 %v1470, %v1470
    %v1475 = vpack.c.b16 %v1471, %v1471
    %v1476 = vpack.c.b16 %v1472, %v1472
    %v1477 = vpack.c.b16 %v1473, %v1473
    %v1479 = vpack.i.b16 %v1474, %v1474
    %v1481 = vlaneseq
    %v1482 = vshrl.u32 %v1481, 7
    %v1483 = vsub.s32 1, %v1482
    %v1484 = vrot.slane %v1479, %v1483
    %v1486 = vpack.i.b16 %v1475, %v1475
    %v1488 = vlaneseq
    %v1489 = vshrl.u32 %v1488, 7
    %v1490 = vsub.s32 1, %v1489
    %v1491 = vrot.slane %v1486, %v1490
    %v1493 = vpack.i.b16 %v1476, %v1476
    %v1495 = vlaneseq
    %v1496 = vshrl.u32 %v1495, 7
    %v1497 = vsub.s32 1, %v1496
    %v1498 = vrot.slane %v1493, %v1497
    %v1500 = vpack.i.b16 %v1477, %v1477
    %v1502 = vlaneseq
    %v1503 = vshrl.u32 %v1502, 7
    %v1504 = vsub.s32 1, %v1503
    %v1505 = vrot.slane %v1500, %v1504
    %v1510 = vunpack.c.l.b16 %v1484
    %v1511 = vunpack.c.l.b16 %v1491
    %v1512 = vunpack.c.l.b16 %v1498
    %v1513 = vunpack.c.l.b16 %v1505
    %v1514 = vpack.c.b16 %v1511, %v1510
    %v1515 = vpack.c.b16 %v1513, %v1512
    %1516 = vrot.lane.b32.xlu0 %v1514, 113
    %v1517 = vpop.permute.xlu0 %1516
    %1518 = vrot.lane.b32.xlu0 %v1515, 113
    %v1519 = vpop.permute.xlu0 %1518
    %v1520 = vrot.slane %v1517, 4
    %v1521 = vrot.slane %v1519, 4
    %v1522 = vsel %vm347, %v1520, %v1517
    %v1523 = vsel %vm152, %v1520, %v1521
    %v1524 = vsel %vm347, %v1523, %v1519
    %v1528 = vmul.bf16 %v1463, %v1522
    %v1529 = vmul.bf16 %v1464, %v1524
    %v1530 = vmul.bf16 %v1465, %v1521
    %1534 = vrot.lane.b32.xlu0 %v1528, 15
    %v1535 = vpop.permute.xlu0 %1534
    %1536 = vrot.lane.b32.xlu0 %v1529, 15
    %v1537 = vpop.permute.xlu0 %1536
    %1538 = vrot.lane.b32.xlu0 %v1530, 15
    %v1539 = vpop.permute.xlu0 %1538
    %v1540 = vrot.slane %v1535, 4
    %v1541 = vrot.slane %v1537, 4
    %v1542 = vrot.slane %v1539, 4
    %v1543 = vsel %vm152, %v1540, %v1541
    %v1544 = vsel %vm387, %v1535, %v1543
    %v1545 = vsel %vm152, %v1541, %v1542
    %v1546 = vsel %vm387, %v1537, %v1545
    %1549 = vst [vmem:[#allocation5 + $0x20] sm:$0xff] %v1544
    %1550 = vst [vmem:[#allocation5 + $0x28] sm:$0xff] %v1546
    %v1551 = vld [vmem:[#allocation4] sm:$0xff]
    %v1552 = vld [vmem:[#allocation4 + $0x8] sm:$0xff]
    %v1553 = vld [vmem:[#allocation4 + $0x10] sm:$0xf]
    %v1554 = vld [vmem:[%s1] sm:$0x22]
    %v1555 = vld [vmem:[%s1 + $0x8] sm:$0x22]
    %v1558 = vunpack.c.l.b16 %v1554
    %v1559 = vunpack.c.h.b16 %v1554
    %v1560 = vunpack.c.l.b16 %v1555
    %v1561 = vunpack.c.h.b16 %v1555
    %v1562 = vpack.c.b16 %v1558, %v1558
    %v1563 = vpack.c.b16 %v1559, %v1559
    %v1564 = vpack.c.b16 %v1560, %v1560
    %v1565 = vpack.c.b16 %v1561, %v1561
    %v1567 = vshrl.u32 %v1562, 16
    %v1568 = vpack.i.b16 %v1567, %v1567
    %v1570 = vlaneseq
    %v1571 = vshrl.u32 %v1570, 7
    %v1572 = vsub.s32 1, %v1571
    %v1573 = vrot.slane %v1568, %v1572
    %v1575 = vshrl.u32 %v1563, 16
    %v1576 = vpack.i.b16 %v1575, %v1575
    %v1578 = vlaneseq
    %v1579 = vshrl.u32 %v1578, 7
    %v1580 = vsub.s32 1, %v1579
    %v1581 = vrot.slane %v1576, %v1580
    %v1583 = vshrl.u32 %v1564, 16
    %v1584 = vpack.i.b16 %v1583, %v1583
    %v1586 = vlaneseq
    %v1587 = vshrl.u32 %v1586, 7
    %v1588 = vsub.s32 1, %v1587
    %v1589 = vrot.slane %v1584, %v1588
    %v1591 = vshrl.u32 %v1565, 16
    %v1592 = vpack.i.b16 %v1591, %v1591
    %v1594 = vlaneseq
    %v1595 = vshrl.u32 %v1594, 7
    %v1596 = vsub.s32 1, %v1595
    %v1597 = vrot.slane %v1592, %v1596
    %v1602 = vunpack.c.l.b16 %v1573
    %v1603 = vunpack.c.l.b16 %v1581
    %v1604 = vunpack.c.l.b16 %v1589
    %v1605 = vunpack.c.l.b16 %v1597
    %v1606 = vpack.c.b16 %v1603, %v1602
    %v1607 = vpack.c.b16 %v1605, %v1604
    %1608 = vrot.lane.b32.xlu0 %v1606, 127
    %v1609 = vpop.permute.xlu0 %1608
    %1610 = vrot.lane.b32.xlu0 %v1607, 127
    %v1611 = vpop.permute.xlu0 %1610
    %v1612 = vrot.slane %v1609, 4
    %v1613 = vrot.slane %v1611, 4
    %v1614 = vsel %vm465, %v1612, %v1609
    %v1615 = vsel %vm152, %v1612, %v1613
    %v1616 = vsel %vm465, %v1615, %v1611
    %v1620 = vmul.bf16 %v1551, %v1614
    %v1621 = vmul.bf16 %v1552, %v1616
    %v1622 = vmul.bf16 %v1553, %v1613
    %1626 = vrot.lane.b32.xlu0 %v1620, 1
    %v1627 = vpop.permute.xlu0 %1626
    %1628 = vrot.lane.b32.xlu0 %v1621, 1
    %v1629 = vpop.permute.xlu0 %1628
    %1630 = vrot.lane.b32.xlu0 %v1622, 1
    %v1631 = vpop.permute.xlu0 %1630
    %v1632 = vrot.slane %v1627, 4
    %v1633 = vrot.slane %v1629, 4
    %v1634 = vrot.slane %v1631, 4
    %v1635 = vsel %vm152, %v1632, %v1633
    %v1636 = vsel %vm506, %v1627, %v1635
    %v1637 = vsel %vm152, %v1633, %v1634
    %v1638 = vsel %vm506, %v1629, %v1637
    %1641 = vst [vmem:[#allocation5 + $0x30] sm:$0xff] %v1636
    %1642 = vst [vmem:[#allocation5 + $0x38] sm:$0xff] %v1638
    %v1643 = vld [vmem:[#allocation4 + $0x4] sm:$0xff]
    %v1644 = vld [vmem:[#allocation4 + $0xc] sm:$0xff]
    %v1645 = vld [vmem:[%s1] sm:$0x44]
    %v1646 = vld [vmem:[%s1 + $0x8] sm:$0x44]
    %v1649 = vunpack.c.l.b16 %v1645
    %v1650 = vunpack.c.h.b16 %v1645
    %v1651 = vunpack.c.l.b16 %v1646
    %v1652 = vunpack.c.h.b16 %v1646
    %v1653 = vpack.c.b16 %v1649, %v1649
    %v1654 = vpack.c.b16 %v1650, %v1650
    %v1655 = vpack.c.b16 %v1651, %v1651
    %v1656 = vpack.c.b16 %v1652, %v1652
    %v1658 = vpack.i.b16 %v1653, %v1653
    %v1660 = vlaneseq
    %v1661 = vshrl.u32 %v1660, 7
    %v1662 = vsub.s32 2, %v1661
    %v1663 = vrot.slane %v1658, %v1662
    %v1665 = vpack.i.b16 %v1654, %v1654
    %v1667 = vlaneseq
    %v1668 = vshrl.u32 %v1667, 7
    %v1669 = vsub.s32 2, %v1668
    %v1670 = vrot.slane %v1665, %v1669
    %v1672 = vpack.i.b16 %v1655, %v1655
    %v1674 = vlaneseq
    %v1675 = vshrl.u32 %v1674, 7
    %v1676 = vsub.s32 2, %v1675
    %v1677 = vrot.slane %v1672, %v1676
    %v1679 = vpack.i.b16 %v1656, %v1656
    %v1681 = vlaneseq
    %v1682 = vshrl.u32 %v1681, 7
    %v1683 = vsub.s32 2, %v1682
    %v1684 = vrot.slane %v1679, %v1683
    %v1689 = vunpack.c.l.b16 %v1663
    %v1690 = vunpack.c.l.b16 %v1670
    %v1691 = vunpack.c.l.b16 %v1677
    %v1692 = vunpack.c.l.b16 %v1684
    %v1693 = vpack.c.b16 %v1690, %v1689
    %v1694 = vpack.c.b16 %v1692, %v1691
    %v1697 = vmul.bf16 %v1643, %v1693
    %v1698 = vmul.bf16 %v1644, %v1694
    %1699 = vst [vmem:[#allocation5 + $0x40] sm:$0xff] %v1697
    %1700 = vst [vmem:[#allocation5 + $0x48] sm:$0xff] %v1698
    %v1701 = vld [vmem:[#allocation4 + $0x4] sm:$0xff]
    %v1702 = vld [vmem:[#allocation4 + $0xc] sm:$0xff]
    %v1703 = vld [vmem:[#allocation4 + $0x14] sm:$0xf]
    %v1704 = vld [vmem:[%s1] sm:$0x44]
    %v1705 = vld [vmem:[%s1 + $0x8] sm:$0x44]
    %v1708 = vunpack.c.l.b16 %v1704
    %v1709 = vunpack.c.h.b16 %v1704
    %v1710 = vunpack.c.l.b16 %v1705
    %v1711 = vunpack.c.h.b16 %v1705
    %v1712 = vpack.c.b16 %v1708, %v1708
    %v1713 = vpack.c.b16 %v1709, %v1709
    %v1714 = vpack.c.b16 %v1710, %v1710
    %v1715 = vpack.c.b16 %v1711, %v1711
    %v1717 = vshrl.u32 %v1712, 16
    %v1718 = vpack.i.b16 %v1717, %v1717
    %v1720 = vlaneseq
    %v1721 = vshrl.u32 %v1720, 7
    %v1722 = vsub.s32 2, %v1721
    %v1723 = vrot.slane %v1718, %v1722
    %v1725 = vshrl.u32 %v1713, 16
    %v1726 = vpack.i.b16 %v1725, %v1725
    %v1728 = vlaneseq
    %v1729 = vshrl.u32 %v1728, 7
    %v1730 = vsub.s32 2, %v1729
    %v1731 = vrot.slane %v1726, %v1730
    %v1733 = vshrl.u32 %v1714, 16
    %v1734 = vpack.i.b16 %v1733, %v1733
    %v1736 = vlaneseq
    %v1737 = vshrl.u32 %v1736, 7
    %v1738 = vsub.s32 2, %v1737
    %v1739 = vrot.slane %v1734, %v1738
    %v1741 = vshrl.u32 %v1715, 16
    %v1742 = vpack.i.b16 %v1741, %v1741
    %v1744 = vlaneseq
    %v1745 = vshrl.u32 %v1744, 7
    %v1746 = vsub.s32 2, %v1745
    %v1747 = vrot.slane %v1742, %v1746
    %v1752 = vunpack.c.l.b16 %v1723
    %v1753 = vunpack.c.l.b16 %v1731
    %v1754 = vunpack.c.l.b16 %v1739
    %v1755 = vunpack.c.l.b16 %v1747
    %v1756 = vpack.c.b16 %v1753, %v1752
    %v1757 = vpack.c.b16 %v1755, %v1754
    %1758 = vrot.lane.b32.xlu0 %v1756, 1
    %v1759 = vpop.permute.xlu0 %1758
    %1760 = vrot.lane.b32.xlu0 %v1757, 1
    %v1761 = vpop.permute.xlu0 %1760
    %v1762 = vrot.slane %v1759, 4
    %v1763 = vrot.slane %v1761, 4
    %v1764 = vsel %vm506, %v1762, %v1759
    %v1765 = vsel %vm152, %v1762, %v1763
    %v1766 = vsel %vm506, %v1765, %v1761
    %v1770 = vmul.bf16 %v1701, %v1764
    %v1771 = vmul.bf16 %v1702, %v1766
    %v1772 = vmul.bf16 %v1703, %v1763
    %1776 = vrot.lane.b32.xlu0 %v1770, 127
    %v1777 = vpop.permute.xlu0 %1776
    %1778 = vrot.lane.b32.xlu0 %v1771, 127
    %v1779 = vpop.permute.xlu0 %1778
    %1780 = vrot.lane.b32.xlu0 %v1772, 127
    %v1781 = vpop.permute.xlu0 %1780
    %v1782 = vrot.slane %v1777, 4
    %v1783 = vrot.slane %v1779, 4
    %v1784 = vrot.slane %v1781, 4
    %v1785 = vsel %vm152, %v1782, %v1783
    %v1786 = vsel %vm465, %v1777, %v1785
    %v1787 = vsel %vm152, %v1783, %v1784
    %v1788 = vsel %vm465, %v1779, %v1787
    %1791 = vst [vmem:[#allocation5 + $0x50] sm:$0xff] %v1786
    %1792 = vst [vmem:[#allocation5 + $0x58] sm:$0xff] %v1788
    %v1793 = vld [vmem:[#allocation4 + $0x4] sm:$0xff]
    %v1794 = vld [vmem:[#allocation4 + $0xc] sm:$0xff]
    %v1795 = vld [vmem:[#allocation4 + $0x14] sm:$0xf]
    %v1796 = vld [vmem:[%s1] sm:$0x88]
    %v1797 = vld [vmem:[%s1 + $0x8] sm:$0x88]
    %v1800 = vunpack.c.l.b16 %v1796
    %v1801 = vunpack.c.h.b16 %v1796
    %v1802 = vunpack.c.l.b16 %v1797
    %v1803 = vunpack.c.h.b16 %v1797
    %v1804 = vpack.c.b16 %v1800, %v1800
    %v1805 = vpack.c.b16 %v1801, %v1801
    %v1806 = vpack.c.b16 %v1802, %v1802
    %v1807 = vpack.c.b16 %v1803, %v1803
    %v1809 = vpack.i.b16 %v1804, %v1804
    %v1811 = vlaneseq
    %v1812 = vshrl.u32 %v1811, 7
    %v1813 = vsub.s32 3, %v1812
    %v1814 = vrot.slane %v1809, %v1813
    %v1816 = vpack.i.b16 %v1805, %v1805
    %v1818 = vlaneseq
    %v1819 = vshrl.u32 %v1818, 7
    %v1820 = vsub.s32 3, %v1819
    %v1821 = vrot.slane %v1816, %v1820
    %v1823 = vpack.i.b16 %v1806, %v1806
    %v1825 = vlaneseq
    %v1826 = vshrl.u32 %v1825, 7
    %v1827 = vsub.s32 3, %v1826
    %v1828 = vrot.slane %v1823, %v1827
    %v1830 = vpack.i.b16 %v1807, %v1807
    %v1832 = vlaneseq
    %v1833 = vshrl.u32 %v1832, 7
    %v1834 = vsub.s32 3, %v1833
    %v1835 = vrot.slane %v1830, %v1834
    %v1840 = vunpack.c.l.b16 %v1814
    %v1841 = vunpack.c.l.b16 %v1821
    %v1842 = vunpack.c.l.b16 %v1828
    %v1843 = vunpack.c.l.b16 %v1835
    %v1844 = vpack.c.b16 %v1841, %v1840
    %v1845 = vpack.c.b16 %v1843, %v1842
    %1846 = vrot.lane.b32.xlu0 %v1844, 15
    %v1847 = vpop.permute.xlu0 %1846
    %1848 = vrot.lane.b32.xlu0 %v1845, 15
    %v1849 = vpop.permute.xlu0 %1848
    %v1850 = vrot.slane %v1847, 4
    %v1851 = vrot.slane %v1849, 4
    %v1852 = vsel %vm387, %v1850, %v1847
    %v1853 = vsel %vm152, %v1850, %v1851
    %v1854 = vsel %vm387, %v1853, %v1849
    %v1858 = vmul.bf16 %v1793, %v1852
    %v1859 = vmul.bf16 %v1794, %v1854
    %v1860 = vmul.bf16 %v1795, %v1851
    %1864 = vrot.lane.b32.xlu0 %v1858, 113
    %v1865 = vpop.permute.xlu0 %1864
    %1866 = vrot.lane.b32.xlu0 %v1859, 113
    %v1867 = vpop.permute.xlu0 %1866
    %1868 = vrot.lane.b32.xlu0 %v1860, 113
    %v1869 = vpop.permute.xlu0 %1868
    %v1870 = vrot.slane %v1865, 4
    %v1871 = vrot.slane %v1867, 4
    %v1872 = vrot.slane %v1869, 4
    %v1873 = vsel %vm152, %v1870, %v1871
    %v1874 = vsel %vm347, %v1865, %v1873
    %v1875 = vsel %vm152, %v1871, %v1872
    %v1876 = vsel %vm347, %v1867, %v1875
    %1879 = vst [vmem:[#allocation5 + $0x60] sm:$0xff] %v1874
    %1880 = vst [vmem:[#allocation5 + $0x68] sm:$0xff] %v1876
    %v1881 = vld [vmem:[#allocation4 + $0x4] sm:$0xff]
    %v1882 = vld [vmem:[#allocation4 + $0xc] sm:$0xff]
    %v1883 = vld [vmem:[#allocation4 + $0x14] sm:$0xf]
    %v1884 = vld [vmem:[%s1] sm:$0x88]
    %v1885 = vld [vmem:[%s1 + $0x8] sm:$0x88]
    %v1888 = vunpack.c.l.b16 %v1884
    %v1889 = vunpack.c.h.b16 %v1884
    %v1890 = vunpack.c.l.b16 %v1885
    %v1891 = vunpack.c.h.b16 %v1885
    %v1892 = vpack.c.b16 %v1888, %v1888
    %v1893 = vpack.c.b16 %v1889, %v1889
    %v1894 = vpack.c.b16 %v1890, %v1890
    %v1895 = vpack.c.b16 %v1891, %v1891
    %v1897 = vshrl.u32 %v1892, 16
    %v1898 = vpack.i.b16 %v1897, %v1897
    %v1900 = vlaneseq
    %v1901 = vshrl.u32 %v1900, 7
    %v1902 = vsub.s32 3, %v1901
    %v1903 = vrot.slane %v1898, %v1902
    %v1905 = vshrl.u32 %v1893, 16
    %v1906 = vpack.i.b16 %v1905, %v1905
    %v1908 = vlaneseq
    %v1909 = vshrl.u32 %v1908, 7
    %v1910 = vsub.s32 3, %v1909
    %v1911 = vrot.slane %v1906, %v1910
    %v1913 = vshrl.u32 %v1894, 16
    %v1914 = vpack.i.b16 %v1913, %v1913
    %v1916 = vlaneseq
    %v1917 = vshrl.u32 %v1916, 7
    %v1918 = vsub.s32 3, %v1917
    %v1919 = vrot.slane %v1914, %v1918
    %v1921 = vshrl.u32 %v1895, 16
    %v1922 = vpack.i.b16 %v1921, %v1921
    %v1924 = vlaneseq
    %v1925 = vshrl.u32 %v1924, 7
    %v1926 = vsub.s32 3, %v1925
    %v1927 = vrot.slane %v1922, %v1926
    %v1932 = vunpack.c.l.b16 %v1903
    %v1933 = vunpack.c.l.b16 %v1911
    %v1934 = vunpack.c.l.b16 %v1919
    %v1935 = vunpack.c.l.b16 %v1927
    %v1936 = vpack.c.b16 %v1933, %v1932
    %v1937 = vpack.c.b16 %v1935, %v1934
    %1938 = vrot.lane.b32.xlu0 %v1936, 16
    %v1939 = vpop.permute.xlu0 %1938
    %1940 = vrot.lane.b32.xlu0 %v1937, 16
    %v1941 = vpop.permute.xlu0 %1940
    %v1942 = vrot.slane %v1939, 4
    %v1943 = vrot.slane %v1941, 4
    %v1944 = vsel %vm273, %v1942, %v1939
    %v1945 = vsel %vm152, %v1942, %v1943
    %v1946 = vsel %vm273, %v1945, %v1941
    %v1950 = vmul.bf16 %v1881, %v1944
    %v1951 = vmul.bf16 %v1882, %v1946
    %v1952 = vmul.bf16 %v1883, %v1943
    %1956 = vrot.lane.b32.xlu0 %v1950, 112
    %v1957 = vpop.permute.xlu0 %1956
    %1958 = vrot.lane.b32.xlu0 %v1951, 112
    %v1959 = vpop.permute.xlu0 %1958
    %1960 = vrot.lane.b32.xlu0 %v1952, 112
    %v1961 = vpop.permute.xlu0 %1960
    %v1962 = vrot.slane %v1957, 4
    %v1963 = vrot.slane %v1959, 4
    %v1964 = vrot.slane %v1961, 4
    %v1965 = vsel %vm152, %v1962, %v1963
    %v1966 = vsel %vm232, %v1957, %v1965
    %v1967 = vsel %vm152, %v1963, %v1964
    %v1968 = vsel %vm232, %v1959, %v1967
    %1971 = vst [vmem:[#allocation5 + $0x70] sm:$0xff] %v1966
    %1972 = vst [vmem:[#allocation5 + $0x78] sm:$0xff] %v1968
    %v1973 = vld [vmem:[#allocation4 + $0x4] sm:$0xff]
    %v1974 = vld [vmem:[#allocation4 + $0xc] sm:$0xff]
    %v1975 = vld [vmem:[#allocation4 + $0x14] sm:$0xf]
    %v1976 = vld [vmem:[%s1 + $0x10] sm:$0x11]
    %v1977 = vld [vmem:[%s1 + $0x18] sm:$0x11]
    %v1980 = vunpack.c.l.b16 %v1976
    %v1981 = vunpack.c.h.b16 %v1976
    %v1982 = vunpack.c.l.b16 %v1977
    %v1983 = vunpack.c.h.b16 %v1977
    %v1984 = vpack.c.b16 %v1980, %v1980
    %v1985 = vpack.c.b16 %v1981, %v1981
    %v1986 = vpack.c.b16 %v1982, %v1982
    %v1987 = vpack.c.b16 %v1983, %v1983
    %v1989 = vpack.i.b16 %v1984, %v1984
    %v1991 = vlaneseq
    %v1992 = vshrl.u32 %v1991, 7
    %v1993 = vsub.s32 0, %v1992
    %v1994 = vrot.slane %v1989, %v1993
    %v1996 = vpack.i.b16 %v1985, %v1985
    %v1998 = vlaneseq
    %v1999 = vshrl.u32 %v1998, 7
    %v2000 = vsub.s32 0, %v1999
    %v2001 = vrot.slane %v1996, %v2000
    %v2003 = vpack.i.b16 %v1986, %v1986
    %v2005 = vlaneseq
    %v2006 = vshrl.u32 %v2005, 7
    %v2007 = vsub.s32 0, %v2006
    %v2008 = vrot.slane %v2003, %v2007
    %v2010 = vpack.i.b16 %v1987, %v1987
    %v2012 = vlaneseq
    %v2013 = vshrl.u32 %v2012, 7
    %v2014 = vsub.s32 0, %v2013
    %v2015 = vrot.slane %v2010, %v2014
    %v2020 = vunpack.c.l.b16 %v1994
    %v2021 = vunpack.c.l.b16 %v2001
    %v2022 = vunpack.c.l.b16 %v2008
    %v2023 = vunpack.c.l.b16 %v2015
    %v2024 = vpack.c.b16 %v2021, %v2020
    %v2025 = vpack.c.b16 %v2023, %v2022
    %2026 = vrot.lane.b32.xlu0 %v2024, 17
    %v2027 = vpop.permute.xlu0 %2026
    %2028 = vrot.lane.b32.xlu0 %v2025, 17
    %v2029 = vpop.permute.xlu0 %2028
    %v2030 = vrot.slane %v2027, 4
    %v2031 = vrot.slane %v2029, 4
    %v2032 = vsel %vm154, %v2030, %v2027
    %v2033 = vsel %vm152, %v2030, %v2031
    %v2034 = vsel %vm154, %v2033, %v2029
    %v2038 = vmul.bf16 %v1973, %v2032
    %v2039 = vmul.bf16 %v1974, %v2034
    %v2040 = vmul.bf16 %v1975, %v2031
    %2044 = vrot.lane.b32.xlu0 %v2038, 111
    %v2045 = vpop.permute.xlu0 %2044
    %2046 = vrot.lane.b32.xlu0 %v2039, 111
    %v2047 = vpop.permute.xlu0 %2046
    %2048 = vrot.lane.b32.xlu0 %v2040, 111
    %v2049 = vpop.permute.xlu0 %2048
    %v2050 = vrot.slane %v2045, 4
    %v2051 = vrot.slane %v2047, 4
    %v2052 = vrot.slane %v2049, 4
    %v2053 = vsel %vm152, %v2050, %v2051
    %v2054 = vsel %vm113, %v2045, %v2053
    %v2055 = vsel %vm152, %v2051, %v2052
    %v2056 = vsel %vm113, %v2047, %v2055
    %2059 = vst [vmem:[#allocation5 + $0x80] sm:$0xff] %v2054
    %2060 = vst [vmem:[#allocation5 + $0x88] sm:$0xff] %v2056
    %v2061 = vld [vmem:[%s5] sm:$0xf]
    %v2062 = vld [vmem:[#allocation5] sm:$0xff]
    %v2063 = vld [vmem:[#allocation5 + $0x8] sm:$0xff]
    %v2064 = vld [vmem:[#allocation5 + $0x10] sm:$0xff]
    %v2065 = vld [vmem:[#allocation5 + $0x18] sm:$0xff]
    %v2066 = vld [vmem:[#allocation5 + $0x20] sm:$0xff]
    %v2067 = vld [vmem:[#allocation5 + $0x28] sm:$0xff]
    %v2068 = vld [vmem:[#allocation5 + $0x30] sm:$0xff]
    %v2069 = vld [vmem:[#allocation5 + $0x38] sm:$0xff]
    %v2070 = vld [vmem:[#allocation5 + $0x40] sm:$0xff]
    %v2071 = vld [vmem:[#allocation5 + $0x48] sm:$0xff]
    %v2072 = vld [vmem:[#allocation5 + $0x50] sm:$0xff]
    %v2073 = vld [vmem:[#allocation5 + $0x58] sm:$0xff]
    %v2074 = vld [vmem:[#allocation5 + $0x60] sm:$0xff]
    %v2075 = vld [vmem:[#allocation5 + $0x68] sm:$0xff]
    %v2076 = vld [vmem:[#allocation5 + $0x70] sm:$0xff]
    %v2077 = vld [vmem:[#allocation5 + $0x78] sm:$0xff]
    %v2078 = vld [vmem:[#allocation5 + $0x80] sm:$0xff]
    %v2079 = vld [vmem:[#allocation5 + $0x88] sm:$0xff]
    %v2098 = vunpack.c.l.b16 %v2062
    %v2099 = vunpack.c.h.b16 %v2062
    %v2100 = vunpack.c.l.b16 %v2063
    %v2101 = vunpack.c.h.b16 %v2063
    %v2102 = vunpack.c.l.b16 %v2064
    %v2103 = vunpack.c.h.b16 %v2064
    %v2104 = vunpack.c.l.b16 %v2065
    %v2105 = vunpack.c.h.b16 %v2065
    %v2106 = vunpack.c.l.b16 %v2066
    %v2107 = vunpack.c.h.b16 %v2066
    %v2108 = vunpack.c.l.b16 %v2067
    %v2109 = vunpack.c.h.b16 %v2067
    %v2110 = vunpack.c.l.b16 %v2068
    %v2111 = vunpack.c.h.b16 %v2068
    %v2112 = vunpack.c.l.b16 %v2069
    %v2113 = vunpack.c.h.b16 %v2069
    %v2114 = vunpack.c.l.b16 %v2070
    %v2115 = vunpack.c.h.b16 %v2070
    %v2116 = vunpack.c.l.b16 %v2071
    %v2117 = vunpack.c.h.b16 %v2071
    %v2118 = vunpack.c.l.b16 %v2072
    %v2119 = vunpack.c.h.b16 %v2072
    %v2120 = vunpack.c.l.b16 %v2073
    %v2121 = vunpack.c.h.b16 %v2073
    %v2122 = vunpack.c.l.b16 %v2074
    %v2123 = vunpack.c.h.b16 %v2074
    %v2124 = vunpack.c.l.b16 %v2075
    %v2125 = vunpack.c.h.b16 %v2075
    %v2126 = vunpack.c.l.b16 %v2076
    %v2127 = vunpack.c.h.b16 %v2076
    %v2128 = vunpack.c.l.b16 %v2077
    %v2129 = vunpack.c.h.b16 %v2077
    %v2130 = vunpack.c.l.b16 %v2078
    %v2131 = vunpack.c.h.b16 %v2078
    %v2132 = vunpack.c.l.b16 %v2079
    %v2133 = vunpack.c.h.b16 %v2079
    %v2134 = vpack.c.b16 %v2102, %v2098
    %v2135 = vpack.c.b16 %v2103, %v2099
    %v2136 = vpack.c.b16 %v2104, %v2100
    %v2137 = vpack.c.b16 %v2105, %v2101
    %v2138 = vpack.c.b16 %v2110, %v2106
    %v2139 = vpack.c.b16 %v2111, %v2107
    %v2140 = vpack.c.b16 %v2112, %v2108
    %v2141 = vpack.c.b16 %v2113, %v2109
    %v2142 = vpack.c.b16 %v2118, %v2114
    %v2143 = vpack.c.b16 %v2119, %v2115
    %v2144 = vpack.c.b16 %v2120, %v2116
    %v2145 = vpack.c.b16 %v2121, %v2117
    %v2146 = vpack.c.b16 %v2126, %v2122
    %v2147 = vpack.c.b16 %v2127, %v2123
    %v2148 = vpack.c.b16 %v2128, %v2124
    %v2149 = vpack.c.b16 %v2129, %v2125
    %v2150 = vpack.c.b16 %v2130, %v2130
    %v2151 = vpack.c.b16 %v2131, %v2131
    %v2152 = vpack.c.b16 %v2132, %v2132
    %v2153 = vpack.c.b16 %v2133, %v2133
    %vm2170 = vcmask 588800
    %v2172 = vsel %vm2170, %v2061, 0
    %vm2174 = vcmask 1043456
    %v2176 = vsel %vm2174, %v2150, 0
    %v2179 = vsel %vm2174, %v2151, 0
    %v2182 = vsel %vm2174, %v2152, 0
    %v2185 = vsel %vm2174, %v2153, 0
    %2187 = vmatprep.subr.bf16.mxu0 %v2135
    %2188 = vmatpush1.bf16.msra.mxu0 %v2134
    %2189 = vmatprep.subr.bf16.mxu0 %v2139
    %2190 = vmatpush1.bf16.msra.mxu0 %v2138
    %2191 = vmatprep.subr.bf16.mxu0 %v2143
    %2192 = vmatpush1.bf16.msra.mxu0 %v2142
    %2193 = vmatprep.subr.bf16.mxu0 %v2147
    %2194 = vmatpush1.bf16.msra.mxu0 %v2146
    %2195 = vmatprep.subr.bf16.mxu0 %v2179
    %2196 = vmatpush1.bf16.msra.mxu0 %v2176
    %2197 = vmatprep.subr.bf16.mxu0 0
    %2198 = vmatpush1.bf16.msra.mxu0 0
    %2199 = vmatprep.subr.bf16.mxu0 0
    %2200 = vmatpush1.bf16.msra.mxu0 0
    %2201 = vmatprep.subr.bf16.mxu0 0
    %2202 = vmatpush1.bf16.msra.mxu0 0
    %2203 = vmatprep.subr.bf16.mxu0 0
    %2204 = vmatpush1.bf16.msra.mxu0 0
    %2205 = vmatprep.subr.bf16.mxu0 0
    %2206 = vmatpush1.bf16.msra.mxu0 0
    %2207 = vmatprep.subr.bf16.mxu0 0
    %2208 = vmatpush1.bf16.msra.mxu0 0
    %2209 = vmatprep.subr.bf16.mxu0 0
    %2210 = vmatpush1.bf16.msra.mxu0 0
    %2211 = vmatprep.subr.bf16.mxu0 0
    %2212 = vmatpush1.bf16.msra.mxu0 0
    %2213 = vmatprep.subr.bf16.mxu0 0
    %2214 = vmatpush1.bf16.msra.mxu0 0
    %2215 = vmatprep.subr.bf16.mxu0 0
    %2216 = vmatpush1.bf16.msra.mxu0 0
    %2217 = vmatprep.subr.bf16.mxu0 0
    %2218 = vmatpush1.bf16.msra.mxu0 0
    %2219 = vmatprep.mubr.bf16.mxu0 0
    %2220 = vmatmul.mubr.bf16.gmra.mrb[0].mxu0 %v2172
    %v2221 = vpop.f32.mrb[0].mxu0
    %v2222 = vadd.f32 0.0, %v2221
    %v2223 = vpop.f32.mrb[0].mxu0
    %v2224 = vadd.f32 0.0, %v2223
    %v2225 = vpop.f32.mrb[0].mxu0
    %v2226 = vpop.f32.mrb[0].mxu0
    %2227 = vdwg.mxu0
    %2228 = vmatprep.subr.bf16.mxu0 %v2137
    %2229 = vmatpush1.bf16.msra.mxu0 %v2136
    %2230 = vmatprep.subr.bf16.mxu0 %v2141
    %2231 = vmatpush1.bf16.msra.mxu0 %v2140
    %2232 = vmatprep.subr.bf16.mxu0 %v2145
    %2233 = vmatpush1.bf16.msra.mxu0 %v2144
    %2234 = vmatprep.subr.bf16.mxu0 %v2149
    %2235 = vmatpush1.bf16.msra.mxu0 %v2148
    %2236 = vmatprep.subr.bf16.mxu0 %v2185
    %2237 = vmatpush1.bf16.msra.mxu0 %v2182
    %2238 = vmatprep.subr.bf16.mxu0 0
    %2239 = vmatpush1.bf16.msra.mxu0 0
    %2240 = vmatprep.subr.bf16.mxu0 0
    %2241 = vmatpush1.bf16.msra.mxu0 0
    %2242 = vmatprep.subr.bf16.mxu0 0
    %2243 = vmatpush1.bf16.msra.mxu0 0
    %2244 = vmatprep.subr.bf16.mxu0 0
    %2245 = vmatpush1.bf16.msra.mxu0 0
    %2246 = vmatprep.subr.bf16.mxu0 0
    %2247 = vmatpush1.bf16.msra.mxu0 0
    %2248 = vmatprep.subr.bf16.mxu0 0
    %2249 = vmatpush1.bf16.msra.mxu0 0
    %2250 = vmatprep.subr.bf16.mxu0 0
    %2251 = vmatpush1.bf16.msra.mxu0 0
    %2252 = vmatprep.subr.bf16.mxu0 0
    %2253 = vmatpush1.bf16.msra.mxu0 0
    %2254 = vmatprep.subr.bf16.mxu0 0
    %2255 = vmatpush1.bf16.msra.mxu0 0
    %2256 = vmatprep.subr.bf16.mxu0 0
    %2257 = vmatpush1.bf16.msra.mxu0 0
    %2258 = vmatprep.subr.bf16.mxu0 0
    %2259 = vmatpush1.bf16.msra.mxu0 0
    %2260 = vmatprep.mubr.bf16.mxu0 0
    %2261 = vmatmul.mubr.bf16.gmra.mrb[0].mxu0 %v2172
    %v2262 = vpop.f32.mrb[0].mxu0
    %v2263 = vadd.f32 0.0, %v2262
    %v2264 = vpop.f32.mrb[0].mxu0
    %v2265 = vadd.f32 0.0, %v2264
    %v2266 = vpop.f32.mrb[0].mxu0
    %v2267 = vpop.f32.mrb[0].mxu0
    %2268 = vdwg.mxu0
    %v2269 = vadd.f32 %v2222, %v2224
    %v2270 = vadd.f32 %v2269, %v2263
    %v2271 = vadd.f32 %v2270, %v2265
    %2272 = vadd.xlane.f32.xlu0 %v2271
    %v2273 = vpop.xlane.xlu0 %2272
    %v2274 = vmul.f32 %v2273, 0.001953125
    %v2275 = vmul.f32 %v2222, %v2222
    %v2276 = vmul.f32 %v2224, %v2224
    %v2277 = vmul.f32 %v2263, %v2263
    %v2278 = vmul.f32 %v2265, %v2265
    %v2279 = vadd.f32 %v2275, %v2276
    %v2280 = vadd.f32 %v2279, %v2277
    %v2281 = vadd.f32 %v2280, %v2278
    %2282 = vadd.xlane.f32.xlu0 %v2281
    %v2283 = vpop.xlane.xlu0 %2282
    %v2284 = vmul.f32 %v2283, 0.001953125
    %v2285 = vld [vmem:[%s6] sm:$0xff]
    %v2286 = vmul.f32 %v2274, %v2274
    %v2287 = vsub.f32 %v2284, %v2286
    %v2288 = vadd.f32 %v2287, 1e-05
    %v2289 = vrsqrt.pop %v2288
    %v2290 = vmul.f32 %v2285, %v2289
    %v2291 = vld [vmem:[%s7] sm:$0xff]
    %v2292 = vmul.f32 %v2274, %v2290
    %v2293 = vsub.f32 %v2291, %v2292
    %2295 = vset.pattern.permute.xlu0 0
    %2296 = vperm.xlu0 %2295, %v2290
    %v2297 = vpop.permute.xlu0 %2296
    %v2299 = vmul.f32 %v2222, %v2297
    %v2300 = vmul.f32 %v2224, %v2297
    %v2301 = vmul.f32 %v2263, %v2297
    %v2302 = vmul.f32 %v2265, %v2297
    %2304 = vset.pattern.permute.xlu0 0
    %2305 = vperm.xlu0 %2304, %v2293
    %v2306 = vpop.permute.xlu0 %2305
    %v2308 = vadd.f32 %v2299, %v2306
    %v2309 = vadd.f32 %v2300, %v2306
    %v2310 = vadd.f32 %v2301, %v2306
    %v2311 = vadd.f32 %v2302, %v2306
    %v2312 = vmax.f32 %v2308, 0.0
    %v2313 = vmax.f32 %v2309, 0.0
    %v2314 = vmax.f32 %v2310, 0.0
    %v2315 = vmax.f32 %v2311, 0.0
    %2316 = vst [vmem:[#allocation9] sm:$0xff] %v2312
    %2317 = vst [vmem:[#allocation9 + $0x8] sm:$0xff] %v2313
    %2318 = vst [vmem:[#allocation9 + $0x10] sm:$0xff] %v2314
    %2319 = vst [vmem:[#allocation9 + $0x18] sm:$0xff] %v2315
    // Predicated region
    $region38: #{tpu_custom_call.1} parent=1 // pred_check
      _
    $region39: #{tpu_custom_call.1} parent=1 // pred_check_branch
      %2321 = sbr.rel (0) target = $region41
    $region40: #{tpu_custom_call.1} parent=1 // pred_region
      %s2323 = ssub.s32 512, 512
      %2324 = vsyncadd [#allocation8], %s2323
      %s2326 = sshll.u32 [#allocation9], 4
      %s2327 = int_to_ptr.vmem [resolvable:$true] %s2326
      %2329 = dma.vmem_to_hbm [thread:$0]  %s2327, 512, %s8, [#allocation8]
    $region41: #{tpu_custom_call.1} parent=1 // pred_fallthru
      _
    // Predicated region
    $region42: #{tpu_custom_call.1} parent=1 // pred_check
      _
    $region43: #{tpu_custom_call.1} parent=1 // pred_check_branch
      %2331 = sbr.rel (0) target = $region45
    $region44: #{tpu_custom_call.1} parent=1 // pred_region
      %2332 = dma.done [#allocation8], 512
    $region45: #{tpu_custom_call.1} parent=1 // pred_fallthru
      _
    %2333 = vsyncpa [#allocation7], 1
    %2334 = vsyncpa [#allocation8], 1

</llo_original>
